<compile_context>
chip_gen: v6e
topology: v6e:2x2x1
jax: 0.10.0
libtpu: 0.0.40
codegen_flags: <defaults>
</compile_context>

<pallas_src>
import numpy as np
import jax
import jax.numpy as jnp
from jax import lax
from jax.experimental import pallas as pl
from jax.experimental.pallas import tpu as pltpu

F32 = jnp.float32
DIM_IN = 4
HIDDEN = [32, 32]          # two hidden layers ('tanh'), final layer linear


# ---------------------------------------------------------------------------
# Host-side fused constants.
# ---------------------------------------------------------------------------
def build_fused_constants(d, dt):
    dd = d * d
    d3 = dd * d
    nL = d * (d - 1) // 2
    nM = d * (d + 1) // 2
    dim_out = 2 * d + nL + nM                      # = d*(d+2)

    # scatter matrices (row-major boolean-mask order, matching torch)
    S_L = np.zeros((nL, dd), np.float32)
    for m, (i, j) in enumerate(zip(*np.tril_indices(d, -1))):
        S_L[m, i * d + j] = 1.0
    S_M = np.zeros((nM, dd), np.float32)
    for m, (i, j) in enumerate(zip(*np.tril_indices(d, 0))):
        S_M[m, i * d + j] = 1.0

    # flat transpose permutation: (A @ PT)[i*d+j] = A[j*d+i]
    PT = np.zeros((dd, dd), np.float32)
    for i in range(d):
        for j in range(d):
            PT[j * d + i, i * d + j] = 1.0

    # broadcast vector across rows: (v @ T)[i*d+j] = v[j]
    T = np.zeros((d, dd), np.float32)
    for i in range(d):
        for j in range(d):
            T[j, i * d + j] = 1.0

    # row-sum: (A @ G)[i] = sum_j A[i*d+j]
    G = np.zeros((dd, d), np.float32)
    for i in range(d):
        for j in range(d):
            G[i * d + j, i] = 1.0

    # --- C: y (dim_out) -> Z = [L_skew | M_flat | dEx | dSx]  (4*dd cols) ---
    C = np.zeros((dim_out, 4 * dd), np.float32)
    C[0:d, 2 * dd:3 * dd] = T                                   # dEdz -> dEx
    C[d:2 * d, 3 * dd:4 * dd] = T                               # dSdz -> dSx
    C[2 * d:2 * d + nL, 0:dd] = S_L @ (np.eye(dd, dtype=np.float32) - PT)  # L - L^T
    C[2 * d + nL:2 * d + nL + nM, dd:2 * dd] = S_M              # M scatter

    # --- EAB: Zf (4*dd) -> [MA | MB] (2*d^3); only the M block contributes ---
    EAB = np.zeros((4 * dd, 2 * d3), np.float32)
    G3 = np.zeros((d3, dd), np.float32)
    for i in range(d):
        for j in range(d):
            for k in range(d):
                col = (i * d + j) * d + k
                EAB[dd + i * d + k, col] = 1.0        # MA picks M[n, i, k]
                EAB[dd + j * d + k, d3 + col] = 1.0   # MB picks M[n, j, k]
                G3[col, i * d + j] = 1.0              # sum over k

    # --- GF: U = [L*dEx | L*dSx | M*dEx | M*dSx] -> [dt*dzdt | deg_E | deg_S] ---
    GF = np.zeros((4 * dd, 3 * d), np.float32)
    GF[0:dd, 0:d] = dt * G            # L @ dEdz   -> dzdt (dt folded in)
    GF[dd:2 * dd, 2 * d:3 * d] = G    # L @ dSdz   -> deg_S
    GF[2 * dd:3 * dd, d:2 * d] = G    # M @ dEdz   -> deg_E
    GF[3 * dd:4 * dd, 0:d] = dt * G   # M @ dSdz   -> dzdt (dt folded in)

    return tuple(jnp.asarray(a) for a in (C, EAB, G3, GF))


# ---------------------------------------------------------------------------
# Pallas kernel: MLP + fused structure construction + GENERIC integrator.
# ---------------------------------------------------------------------------
def spnn_kernel(x_ref, w0_ref, b0_ref, w1_ref, b1_ref, w2_ref, b2_ref,
                c_ref, eab_ref, g3_ref, gf_ref, out_ref):
    d = x_ref.shape[1]
    dd = d * d
    d3 = dd * d
    x = x_ref[...]                                                  # (TN, d)

    # ---- MLP: tanh, tanh, linear ----
    h = jnp.tanh(jnp.dot(x, w0_ref[...], preferred_element_type=F32) + b0_ref[...])
    h = jnp.tanh(jnp.dot(h, w1_ref[...], preferred_element_type=F32) + b1_ref[...])
    y = jnp.dot(h, w2_ref[...], preferred_element_type=F32) + b2_ref[...]   # (TN, d*(d+2))

    # ---- one fused structure matmul: Z = [L_skew | M_flat | dEx | dSx] ----
    z = jnp.dot(y, c_ref[...], preferred_element_type=F32)          # (TN, 4*dd)

    # diag(M) -> |diag(M)| via a single select (mask built from iota, no constant op)
    col = lax.broadcasted_iota(jnp.int32, (1, 4 * dd), 1)
    in_m = (col >= dd) & (col < 2 * dd)
    mdiag = in_m & (((col - dd) % (d + 1)) == 0)
    zf = jnp.where(mdiag, jnp.abs(z), z)

    # ---- M @ M^T in flat form:  [MA | MB] = Zf @ EAB ;  MMt = (MA*MB) @ G3 ----
    p = jnp.dot(zf, eab_ref[...], preferred_element_type=F32)       # (TN, 2*d3)
    mmt = jnp.dot(p[:, :d3] * p[:, d3:], g3_ref[...],
                  preferred_element_type=F32)                       # (TN, dd)

    # ---- integrator: one matmul gives [dt*dzdt | deg_E | deg_S] ----
    lsk = zf[:, 0:dd]
    dex = zf[:, 2 * dd:3 * dd]
    dsx = zf[:, 3 * dd:4 * dd]
    u = jnp.concatenate([lsk * dex, lsk * dsx, mmt * dex, mmt * dsx], axis=1)
    r = jnp.dot(u, gf_ref[...], preferred_element_type=F32)         # (TN, 3*d)

    # x1 = x + dt*dzdt lives in the first d columns; deg_E / deg_S follow.
    xpad = jnp.concatenate([x, jnp.zeros((x.shape[0], 2 * d), F32)], axis=1)
    out_ref[...] = r + xpad


# ---------------------------------------------------------------------------
# Wrapper: gridded over the batch, weights/constants VMEM-resident.
# ---------------------------------------------------------------------------
def make_spnn_forward(d, dt, params, block_n=128):
    C, EAB, G3, GF = build_fused_constants(d, dt)
    (W0, b0), (W1, b1), (W2, b2) = params

    def resident(arr):
        return pl.BlockSpec(arr.shape, lambda i: (0, 0))

    def forward(x):
        N = x.shape[0]
        tn = min(block_n, N)
        grid = (pl.cdiv(N, tn),)
        out = pl.pallas_call(
            spnn_kernel,
            out_shape=jax.ShapeDtypeStruct((N, 3 * d), F32),
            grid=grid,
            in_specs=[
                pl.BlockSpec((tn, d), lambda i: (i, 0)),     # x: streamed
                resident(W0), resident(b0),
                resident(W1), resident(b1),
                resident(W2), resident(b2),
                resident(C), resident(EAB), resident(G3), resident(GF),
            ],
            out_specs=pl.BlockSpec((tn, 3 * d), lambda i: (i, 0)),
            compiler_params=pltpu.CompilerParams(
                dimension_semantics=("parallel",)),
        )(x, W0, b0, W1, b1, W2, b2, C, EAB, G3, GF)
        return out[:, 0:d], out[:, d:2 * d], out[:, 2 * d:3 * d]

    return forward


# ---------------------------------------------------------------------------
# Deterministic parameter init (xavier-normal-like weights, zero biases)
# ---------------------------------------------------------------------------
def init_params(key, layer_vec):
    params = []
    for k in range(len(layer_vec) - 1):
        key, wk = jax.random.split(key)
        fan_in, fan_out = layer_vec[k], layer_vec[k + 1]
        scale = np.sqrt(2.0 / (fan_in + fan_out))
        W = scale * jax.random.normal(wk, (fan_in, fan_out), F32)   # stored (in, out)
        b = jnp.zeros((1, fan_out), F32)
        params.append((W, b))
    return params


# ---------------------------------------------------------------------------
# Pure-JAX reference mirroring the PyTorch forward() semantics exactly.
# ---------------------------------------------------------------------------
def reference_forward(x, dt, params, d):
    (W0, b0), (W1, b1), (W2, b2) = params
    h = jnp.tanh(x @ W0 + b0)
    h = jnp.tanh(h @ W1 + b1)
    y = h @ W2 + b2
    nL = d * (d - 1) // 2
    N = x.shape[0]
    dEdz = y[:, :d]
    dSdz = y[:, d:2 * d]
    Lvec = y[:, 2 * d:2 * d + nL]
    Mvec = y[:, 2 * d + nL:]
    il, jl = np.tril_indices(d, -1)
    im, jm = np.tril_indices(d, 0)
    L = jnp.zeros((N, d, d), F32).at[:, il, jl].set(Lvec)
    M = jnp.zeros((N, d, d), F32).at[:, im, jm].set(Mvec)
    L = L - jnp.transpose(L, (0, 2, 1))
    eye = jnp.eye(d, dtype=F32)
    M = M - M * eye + jnp.abs(M) * eye
    M = jnp.einsum('nik,njk->nij', M, M)
    LdE = jnp.einsum('nij,nj->ni', L, dEdz)
    MdS = jnp.einsum('nij,nj->ni', M, dSdz)
    MdE = jnp.einsum('nij,nj->ni', M, dEdz)
    LdS = jnp.einsum('nij,nj->ni', L, dSdz)
    return x + dt * (LdE + MdS), MdE, LdS


if __name__ == "__main__":
    key = jax.random.PRNGKey(0)
    kx, kp = jax.random.split(key)

    N = 256                    # batch (gridded: 2 tiles of 128 rows)
    dt = 0.01
    dim_out = DIM_IN * (DIM_IN + 2)           # = 24, required by SPNN slicing
    layer_vec = [DIM_IN] + HIDDEN + [dim_out]

    x = jax.random.normal(kx, (N, DIM_IN), F32)
    params = init_params(kp, layer_vec)

    forward = make_spnn_forward(DIM_IN, dt, params, block_n=128)
    x1, deg_E, deg_S = forward(x)
    jax.block_until_ready((x1, deg_E, deg_S))

    x1_r, deg_E_r, deg_S_r = reference_forward(x, dt, params, DIM_IN)
    assert jnp.allclose(x1, x1_r, atol=1e-4, rtol=1e-4), "x1 mismatch"
    assert jnp.allclose(deg_E, deg_E_r, atol=1e-4, rtol=1e-4), "deg_E mismatch"
    assert jnp.allclose(deg_S, deg_S_r, atol=1e-4, rtol=1e-4), "deg_S mismatch"

    print("KERNEL_OK")
</pallas_src>

<mosaic_0001>
module attributes {stable_mosaic.version = 11 : i64} {
  func.func @spnn_kernel(%arg0: i32, %arg1: memref<128x4xf32, #tpu.memory_space<vmem>>, %arg2: memref<4x32xf32, #tpu.memory_space<vmem>>, %arg3: memref<1x32xf32, #tpu.memory_space<vmem>>, %arg4: memref<32x32xf32, #tpu.memory_space<vmem>>, %arg5: memref<1x32xf32, #tpu.memory_space<vmem>>, %arg6: memref<32x24xf32, #tpu.memory_space<vmem>>, %arg7: memref<1x24xf32, #tpu.memory_space<vmem>>, %arg8: memref<24x64xf32, #tpu.memory_space<vmem>>, %arg9: memref<64x128xf32, #tpu.memory_space<vmem>>, %arg10: memref<64x16xf32, #tpu.memory_space<vmem>>, %arg11: memref<64x12xf32, #tpu.memory_space<vmem>>, %arg12: memref<128x12xf32, #tpu.memory_space<vmem>>) attributes {dimension_semantics = [#tpu.dimension_semantics<parallel>], iteration_bounds = array<i64: 2>, scalar_prefetch = 0 : i64, scratch_operands = 0 : i64, tpu.core_type = #tpu.core_type<tc>, window_params = [{transform_indices = @transform_0, window_bounds = array<i64: 128, 4>}, {pipeline_mode = #tpu.pipeline_mode<synchronous>, transform_indices = @transform_1, window_bounds = array<i64: 4, 32>}, {pipeline_mode = #tpu.pipeline_mode<synchronous>, transform_indices = @transform_2, window_bounds = array<i64: 1, 32>}, {pipeline_mode = #tpu.pipeline_mode<synchronous>, transform_indices = @transform_3, window_bounds = array<i64: 32, 32>}, {pipeline_mode = #tpu.pipeline_mode<synchronous>, transform_indices = @transform_4, window_bounds = array<i64: 1, 32>}, {pipeline_mode = #tpu.pipeline_mode<synchronous>, transform_indices = @transform_5, window_bounds = array<i64: 32, 24>}, {pipeline_mode = #tpu.pipeline_mode<synchronous>, transform_indices = @transform_6, window_bounds = array<i64: 1, 24>}, {pipeline_mode = #tpu.pipeline_mode<synchronous>, transform_indices = @transform_7, window_bounds = array<i64: 24, 64>}, {pipeline_mode = #tpu.pipeline_mode<synchronous>, transform_indices = @transform_8, window_bounds = array<i64: 64, 128>}, {pipeline_mode = #tpu.pipeline_mode<synchronous>, transform_indices = @transform_9, window_bounds = array<i64: 64, 16>}, {pipeline_mode = #tpu.pipeline_mode<synchronous>, transform_indices = @transform_10, window_bounds = array<i64: 64, 12>}, {transform_indices = @transform_11, window_bounds = array<i64: 128, 12>}]} {
    %c0 = arith.constant 0 : index
    %c0_0 = arith.constant 0 : index
    %0 = vector.load %arg1[%c0, %c0_0] : memref<128x4xf32, #tpu.memory_space<vmem>>, vector<128x4xf32>
    %c0_1 = arith.constant 0 : index
    %c0_2 = arith.constant 0 : index
    %1 = vector.load %arg2[%c0_1, %c0_2] : memref<4x32xf32, #tpu.memory_space<vmem>>, vector<4x32xf32>
    %cst = arith.constant dense<0.000000e+00> : vector<128x32xf32>
    %2 = tpu.matmul %0, %1, %cst {dimension_numbers = #tpu.dot_dimension_numbers<[1], [0], [0], [1], [0, 0, 1, 1], [], []>} : vector<128x4xf32>, vector<4x32xf32>, vector<128x32xf32> -> vector<128x32xf32>
    %c0_3 = arith.constant 0 : index
    %c0_4 = arith.constant 0 : index
    %3 = vector.load %arg3[%c0_3, %c0_4] : memref<1x32xf32, #tpu.memory_space<vmem>>, vector<1x32xf32>
    %4 = vector.broadcast %3 : vector<1x32xf32> to vector<128x32xf32>
    %5 = arith.addf %2, %4 : vector<128x32xf32>
    %6 = math.tanh %5 : vector<128x32xf32>
    %c0_5 = arith.constant 0 : index
    %c0_6 = arith.constant 0 : index
    %7 = vector.load %arg4[%c0_5, %c0_6] : memref<32x32xf32, #tpu.memory_space<vmem>>, vector<32x32xf32>
    %cst_7 = arith.constant dense<0.000000e+00> : vector<128x32xf32>
    %8 = tpu.matmul %6, %7, %cst_7 {dimension_numbers = #tpu.dot_dimension_numbers<[1], [0], [0], [1], [0, 0, 1, 1], [], []>} : vector<128x32xf32>, vector<32x32xf32>, vector<128x32xf32> -> vector<128x32xf32>
    %c0_8 = arith.constant 0 : index
    %c0_9 = arith.constant 0 : index
    %9 = vector.load %arg5[%c0_8, %c0_9] : memref<1x32xf32, #tpu.memory_space<vmem>>, vector<1x32xf32>
    %10 = vector.broadcast %9 : vector<1x32xf32> to vector<128x32xf32>
    %11 = arith.addf %8, %10 : vector<128x32xf32>
    %12 = math.tanh %11 : vector<128x32xf32>
    %c0_10 = arith.constant 0 : index
    %c0_11 = arith.constant 0 : index
    %13 = vector.load %arg6[%c0_10, %c0_11] : memref<32x24xf32, #tpu.memory_space<vmem>>, vector<32x24xf32>
    %cst_12 = arith.constant dense<0.000000e+00> : vector<128x24xf32>
    %14 = tpu.matmul %12, %13, %cst_12 {dimension_numbers = #tpu.dot_dimension_numbers<[1], [0], [0], [1], [0, 0, 1, 1], [], []>} : vector<128x32xf32>, vector<32x24xf32>, vector<128x24xf32> -> vector<128x24xf32>
    %c0_13 = arith.constant 0 : index
    %c0_14 = arith.constant 0 : index
    %15 = vector.load %arg7[%c0_13, %c0_14] : memref<1x24xf32, #tpu.memory_space<vmem>>, vector<1x24xf32>
    %16 = vector.broadcast %15 : vector<1x24xf32> to vector<128x24xf32>
    %17 = arith.addf %14, %16 : vector<128x24xf32>
    %c0_15 = arith.constant 0 : index
    %c0_16 = arith.constant 0 : index
    %18 = vector.load %arg8[%c0_15, %c0_16] : memref<24x64xf32, #tpu.memory_space<vmem>>, vector<24x64xf32>
    %cst_17 = arith.constant dense<0.000000e+00> : vector<128x64xf32>
    %19 = tpu.matmul %17, %18, %cst_17 {dimension_numbers = #tpu.dot_dimension_numbers<[1], [0], [0], [1], [0, 0, 1, 1], [], []>} : vector<128x24xf32>, vector<24x64xf32>, vector<128x64xf32> -> vector<128x64xf32>
    %20 = tpu.iota {dimensions = array<i32: 1>} : vector<1x64xi32>
    %c16_i32 = arith.constant 16 : i32
    %21 = vector.broadcast %c16_i32 : i32 to vector<1x64xi32>
    %22 = arith.cmpi sge, %20, %21 : vector<1x64xi32>
    %c32_i32 = arith.constant 32 : i32
    %23 = vector.broadcast %c32_i32 : i32 to vector<1x64xi32>
    %24 = arith.cmpi slt, %20, %23 : vector<1x64xi32>
    %25 = arith.andi %22, %24 : vector<1x64xi1>
    %c16_i32_18 = arith.constant 16 : i32
    %26 = vector.broadcast %c16_i32_18 : i32 to vector<1x64xi32>
    %27 = arith.subi %20, %26 : vector<1x64xi32>
    %c5_i32 = arith.constant 5 : i32
    %c0_i32 = arith.constant 0 : i32
    %28 = arith.cmpi eq, %c5_i32, %c0_i32 : i32
    %c1_i32 = arith.constant 1 : i32
    %29 = arith.select %28, %c1_i32, %c5_i32 : i32
    %30 = vector.broadcast %29 : i32 to vector<1x64xi32>
    %31 = arith.remsi %27, %30 : vector<1x64xi32>
    %c0_i32_19 = arith.constant 0 : i32
    %32 = vector.broadcast %c0_i32_19 : i32 to vector<1x64xi32>
    %33 = arith.cmpi ne, %31, %32 : vector<1x64xi32>
    %c0_i32_20 = arith.constant 0 : i32
    %34 = vector.broadcast %c0_i32_20 : i32 to vector<1x64xi32>
    %35 = arith.cmpi slt, %31, %34 : vector<1x64xi32>
    %c0_i32_21 = arith.constant 0 : i32
    %36 = arith.cmpi slt, %29, %c0_i32_21 : i32
    %37 = vector.broadcast %36 : i1 to vector<1x64xi1>
    %38 = vector.broadcast %37 : vector<1x64xi1> to vector<1x64xi1>
    %39 = arith.xori %35, %38 : vector<1x64xi1>
    %40 = arith.andi %39, %33 : vector<1x64xi1>
    %41 = vector.broadcast %29 : i32 to vector<1x64xi32>
    %42 = arith.addi %31, %41 : vector<1x64xi32>
    %43 = arith.select %40, %42, %31 : vector<1x64xi1>, vector<1x64xi32>
    %c0_i32_22 = arith.constant 0 : i32
    %44 = vector.broadcast %c0_i32_22 : i32 to vector<1x64xi32>
    %45 = arith.cmpi eq, %43, %44 : vector<1x64xi32>
    %46 = arith.andi %25, %45 : vector<1x64xi1>
    %47 = math.absf %19 : vector<128x64xf32>
    %48 = vector.shape_cast %46 : vector<1x64xi1> to vector<1x64xi1>
    %49 = vector.broadcast %48 : vector<1x64xi1> to vector<128x64xi1>
    %50 = arith.select %49, %47, %19 : vector<128x64xi1>, vector<128x64xf32>
    %c0_23 = arith.constant 0 : index
    %c0_24 = arith.constant 0 : index
    %51 = vector.load %arg9[%c0_23, %c0_24] : memref<64x128xf32, #tpu.memory_space<vmem>>, vector<64x128xf32>
    %cst_25 = arith.constant dense<0.000000e+00> : vector<128x128xf32>
    %52 = tpu.matmul %50, %51, %cst_25 {dimension_numbers = #tpu.dot_dimension_numbers<[1], [0], [0], [1], [0, 0, 1, 1], [], []>} : vector<128x64xf32>, vector<64x128xf32>, vector<128x128xf32> -> vector<128x128xf32>
    %53 = vector.extract_strided_slice %52 {offsets = [0, 0], sizes = [128, 64], strides = [1, 1]} : vector<128x128xf32> to vector<128x64xf32>
    %54 = vector.extract_strided_slice %52 {offsets = [0, 64], sizes = [128, 64], strides = [1, 1]} : vector<128x128xf32> to vector<128x64xf32>
    %55 = arith.mulf %53, %54 : vector<128x64xf32>
    %c0_26 = arith.constant 0 : index
    %c0_27 = arith.constant 0 : index
    %56 = vector.load %arg10[%c0_26, %c0_27] : memref<64x16xf32, #tpu.memory_space<vmem>>, vector<64x16xf32>
    %cst_28 = arith.constant dense<0.000000e+00> : vector<128x16xf32>
    %57 = tpu.matmul %55, %56, %cst_28 {dimension_numbers = #tpu.dot_dimension_numbers<[1], [0], [0], [1], [0, 0, 1, 1], [], []>} : vector<128x64xf32>, vector<64x16xf32>, vector<128x16xf32> -> vector<128x16xf32>
    %58 = vector.extract_strided_slice %50 {offsets = [0, 0], sizes = [128, 16], strides = [1, 1]} : vector<128x64xf32> to vector<128x16xf32>
    %59 = vector.extract_strided_slice %50 {offsets = [0, 32], sizes = [128, 16], strides = [1, 1]} : vector<128x64xf32> to vector<128x16xf32>
    %60 = vector.extract_strided_slice %50 {offsets = [0, 48], sizes = [128, 16], strides = [1, 1]} : vector<128x64xf32> to vector<128x16xf32>
    %61 = arith.mulf %58, %59 : vector<128x16xf32>
    %62 = arith.mulf %58, %60 : vector<128x16xf32>
    %63 = arith.mulf %57, %59 : vector<128x16xf32>
    %64 = arith.mulf %57, %60 : vector<128x16xf32>
    %65 = tpu.concatenate %61, %62, %63, %64 in 1 : vector<128x16xf32>, vector<128x16xf32>, vector<128x16xf32>, vector<128x16xf32> -> vector<128x64xf32>
    %c0_29 = arith.constant 0 : index
    %c0_30 = arith.constant 0 : index
    %66 = vector.load %arg11[%c0_29, %c0_30] : memref<64x12xf32, #tpu.memory_space<vmem>>, vector<64x12xf32>
    %cst_31 = arith.constant dense<0.000000e+00> : vector<128x12xf32>
    %67 = tpu.matmul %65, %66, %cst_31 {dimension_numbers = #tpu.dot_dimension_numbers<[1], [0], [0], [1], [0, 0, 1, 1], [], []>} : vector<128x64xf32>, vector<64x12xf32>, vector<128x12xf32> -> vector<128x12xf32>
    %cst_32 = arith.constant 0.000000e+00 : f32
    %68 = vector.broadcast %cst_32 : f32 to vector<128x8xf32>
    %69 = tpu.concatenate %0, %68 in 1 : vector<128x4xf32>, vector<128x8xf32> -> vector<128x12xf32>
    %70 = arith.addf %67, %69 : vector<128x12xf32>
    %c0_33 = arith.constant 0 : index
    %c0_34 = arith.constant 0 : index
    %71 = vector.load %arg12[%c0_33, %c0_34] : memref<128x12xf32, #tpu.memory_space<vmem>>, vector<128x12xf32>
    tpu.vector_store %arg12[%c0_33, %c0_34], %70 {strides = array<i32>} : memref<128x12xf32, #tpu.memory_space<vmem>>, vector<128x12xf32>,
    return
  }
  func.func @transform_0(%arg0: i32) -> (i32, i32) {
    %c0_i32 = arith.constant 0 : i32
    %c0_i32_0 = arith.constant 0 : i32
    return %arg0, %c0_i32 : i32, i32
  }
  func.func @transform_1(%arg0: i32) -> (i32, i32) {
    %c0_i32 = arith.constant 0 : i32
    %c0_i32_0 = arith.constant 0 : i32
    %c0_i32_1 = arith.constant 0 : i32
    return %c0_i32, %c0_i32_0 : i32, i32
  }
  func.func @transform_2(%arg0: i32) -> (i32, i32) {
    %c0_i32 = arith.constant 0 : i32
    %c0_i32_0 = arith.constant 0 : i32
    %c0_i32_1 = arith.constant 0 : i32
    return %c0_i32, %c0_i32_0 : i32, i32
  }
  func.func @transform_3(%arg0: i32) -> (i32, i32) {
    %c0_i32 = arith.constant 0 : i32
    %c0_i32_0 = arith.constant 0 : i32
    %c0_i32_1 = arith.constant 0 : i32
    return %c0_i32, %c0_i32_0 : i32, i32
  }
  func.func @transform_4(%arg0: i32) -> (i32, i32) {
    %c0_i32 = arith.constant 0 : i32
    %c0_i32_0 = arith.constant 0 : i32
    %c0_i32_1 = arith.constant 0 : i32
    return %c0_i32, %c0_i32_0 : i32, i32
  }
  func.func @transform_5(%arg0: i32) -> (i32, i32) {
    %c0_i32 = arith.constant 0 : i32
    %c0_i32_0 = arith.constant 0 : i32
    %c0_i32_1 = arith.constant 0 : i32
    return %c0_i32, %c0_i32_0 : i32, i32
  }
  func.func @transform_6(%arg0: i32) -> (i32, i32) {
    %c0_i32 = arith.constant 0 : i32
    %c0_i32_0 = arith.constant 0 : i32
    %c0_i32_1 = arith.constant 0 : i32
    return %c0_i32, %c0_i32_0 : i32, i32
  }
  func.func @transform_7(%arg0: i32) -> (i32, i32) {
    %c0_i32 = arith.constant 0 : i32
    %c0_i32_0 = arith.constant 0 : i32
    %c0_i32_1 = arith.constant 0 : i32
    return %c0_i32, %c0_i32_0 : i32, i32
  }
  func.func @transform_8(%arg0: i32) -> (i32, i32) {
    %c0_i32 = arith.constant 0 : i32
    %c0_i32_0 = arith.constant 0 : i32
    %c0_i32_1 = arith.constant 0 : i32
    return %c0_i32, %c0_i32_0 : i32, i32
  }
  func.func @transform_9(%arg0: i32) -> (i32, i32) {
    %c0_i32 = arith.constant 0 : i32
    %c0_i32_0 = arith.constant 0 : i32
    %c0_i32_1 = arith.constant 0 : i32
    return %c0_i32, %c0_i32_0 : i32, i32
  }
  func.func @transform_10(%arg0: i32) -> (i32, i32) {
    %c0_i32 = arith.constant 0 : i32
    %c0_i32_0 = arith.constant 0 : i32
    %c0_i32_1 = arith.constant 0 : i32
    return %c0_i32, %c0_i32_0 : i32, i32
  }
  func.func @transform_11(%arg0: i32) -> (i32, i32) {
    %c0_i32 = arith.constant 0 : i32
    %c0_i32_0 = arith.constant 0 : i32
    return %arg0, %c0_i32 : i32, i32
  }
}

</mosaic_0001>

<llo_original>
// kernel: tpu_custom_call.1
$region0: #{tpu_custom_call.1}
  #allocation0 [shape = 'u32[]', space=smem, size = 0x4, offset = 0x4, fixed_abs, tag = 'smem constant byte address 0x4 - core index']
  #allocation1 [shape = 'u32[144,128]{1,0:T(1,128)}', space=vmem, size = 0x12000, scoped, tag = 'internal scratch']
  %s0 = inlined_call_operand.vmem [shape: f32[256,4], index: 0, kind: input, shape index: {}]
  %s1 = inlined_call_operand.vmem [shape: f32[4,32], index: 1, kind: input, shape index: {}]
  %s2 = inlined_call_operand.vmem [shape: f32[1,32], index: 2, kind: input, shape index: {}]
  %s3 = inlined_call_operand.vmem [shape: f32[32,32], index: 3, kind: input, shape index: {}]
  %s4 = inlined_call_operand.vmem [shape: f32[1,32], index: 4, kind: input, shape index: {}]
  %s5 = inlined_call_operand.vmem [shape: f32[32,24], index: 5, kind: input, shape index: {}]
  %s6 = inlined_call_operand.vmem [shape: f32[1,24], index: 6, kind: input, shape index: {}]
  %s7 = inlined_call_operand.vmem [shape: f32[24,64], index: 7, kind: input, shape index: {}]
  %s8 = inlined_call_operand.vmem [shape: f32[64,128], index: 8, kind: input, shape index: {}]
  %s9 = inlined_call_operand.vmem [shape: f32[64,16], index: 9, kind: input, shape index: {}]
  %s10 = inlined_call_operand.vmem [shape: f32[64,12], index: 10, kind: input, shape index: {}]
  %s11 = inlined_call_operand.vmem [shape: f32[256,12], index: 11, kind: output, shape index: {}]
  %s12 = sld [smem:[#allocation0]]
  $region77: #{tpu_custom_call.1} parent=0
    _
  %s14 = ssub.s32 1, %s12
  %s15 = scalar_select 0, %s14, %s12
  loop: start=0, step=1, limit=4
  $region2: #{tpu_custom_call.1} parent=0 // loop_pre_header
    _
  $region3: #{tpu_custom_call.1} parent=0 // loop_header
    %s17 = sphi 0, %s21
    %p18 = scmp.ge.s32.totalorder %s17, 4
    %s27 = sphi 0, %s29
    %s30 = sphi 0, %s27
    %s31 = sphi 0, %s30
    %s47 = sphi 0, %s31
    %s51 = sphi 0, %s51
    %s53 = sphi 0, %s51
    %s54 = sphi 0, %s53
    %s68 = sphi 0, %s54
    %s72 = sphi 0, %s72
    %s74 = sphi 0, %s72
    %s75 = sphi 0, %s74
    %s89 = sphi 0, %s75
    %s93 = sphi 0, %s93
    %s95 = sphi 0, %s93
    %s96 = sphi 0, %s95
    %s110 = sphi 0, %s96
    %s114 = sphi 0, %s114
    %s116 = sphi 0, %s114
    %s117 = sphi 0, %s116
    %s131 = sphi 0, %s117
    %s135 = sphi 0, %s135
    %s137 = sphi 0, %s135
    %s138 = sphi 0, %s137
    %s152 = sphi 0, %s138
    %s156 = sphi 0, %s156
    %s158 = sphi 0, %s156
    %s159 = sphi 0, %s158
    %s173 = sphi 0, %s159
    %s177 = sphi 0, %s177
    %s179 = sphi 0, %s177
    %s180 = sphi 0, %s179
    %s194 = sphi 0, %s180
    %s198 = sphi 0, %s198
    %s200 = sphi 0, %s198
    %s201 = sphi 0, %s200
    %s215 = sphi 0, %s201
    %s219 = sphi 0, %s219
    %s221 = sphi 0, %s219
    %s222 = sphi 0, %s221
    %s236 = sphi 0, %s222
    %s240 = sphi 0, %s240
    %s242 = sphi 0, %s240
    %s243 = sphi 0, %s242
    %s257 = sphi 0, %s243
    %s263 = sphi 0, %s265
    %s266 = sphi 0, %s263
    %s267 = sphi 0, %s266
    %s283 = sphi 0, %s267
  $region4: #{tpu_custom_call.1} parent=0 // loop_header_branch
    %20 = sbr.rel (%p18) target = $region8
  $region5: #{tpu_custom_call.1} parent=0 // loop_body
    %s22 = ssub.s32 %s17, 1
    %s23 = ssub.s32 %s17, 2
    %s24 = sadd.s32 %s17, 1
    %s25 = ssub.s32 %s17, %s24
    %p26 = scmp.eq.s32.totalorder %s25, 0
    %s28 = sadd.s32 %s27, 1
    %s29 = scalar_select %p26, %s27, %s28
    %p32 = pneg %p26
    %p33 = scmp.eq.s32.totalorder %s17, 1
    %p34 = por %p32, %p33
    %p35 = scmp.ne.s32.totalorder %s27, %s30
    %p36 = scmp.eq.s32.totalorder %s17, 0
    %p37 = por %p35, %p36
    %p38 = scmp.ne.s32.totalorder %s27, %s30
    %p39 = scmp.eq.s32.totalorder %s22, 1
    %p40 = por %p38, %p39
    %p41 = scmp.ne.s32.totalorder %s30, %s31
    %p42 = scmp.eq.s32.totalorder %s22, 0
    %p43 = por %p41, %p42
    %p44 = scmp.ne.s32.totalorder %s30, %s31
    %p45 = scmp.eq.s32.totalorder %s23, 1
    %p46 = por %p44, %p45
    %p48 = scmp.ne.s32.totalorder %s31, %s47
    %p49 = scmp.eq.s32.totalorder %s23, 0
    %p50 = por %p48, %p49
    %s52 = sadd.s32 %s51, 1
    %p55 = scmp.eq.s32.totalorder %s17, 1
    %p56 = scmp.ne.s32.totalorder %s51, %s53
    %p57 = scmp.eq.s32.totalorder %s17, 0
    %p58 = por %p56, %p57
    %p59 = scmp.ne.s32.totalorder %s51, %s53
    %p60 = scmp.eq.s32.totalorder %s22, 1
    %p61 = por %p59, %p60
    %p62 = scmp.ne.s32.totalorder %s53, %s54
    %p63 = scmp.eq.s32.totalorder %s22, 0
    %p64 = por %p62, %p63
    %p65 = scmp.ne.s32.totalorder %s53, %s54
    %p66 = scmp.eq.s32.totalorder %s23, 1
    %p67 = por %p65, %p66
    %p69 = scmp.ne.s32.totalorder %s54, %s68
    %p70 = scmp.eq.s32.totalorder %s23, 0
    %p71 = por %p69, %p70
    %s73 = sadd.s32 %s72, 1
    %p76 = scmp.eq.s32.totalorder %s17, 1
    %p77 = scmp.ne.s32.totalorder %s72, %s74
    %p78 = scmp.eq.s32.totalorder %s17, 0
    %p79 = por %p77, %p78
    %p80 = scmp.ne.s32.totalorder %s72, %s74
    %p81 = scmp.eq.s32.totalorder %s22, 1
    %p82 = por %p80, %p81
    %p83 = scmp.ne.s32.totalorder %s74, %s75
    %p84 = scmp.eq.s32.totalorder %s22, 0
    %p85 = por %p83, %p84
    %p86 = scmp.ne.s32.totalorder %s74, %s75
    %p87 = scmp.eq.s32.totalorder %s23, 1
    %p88 = por %p86, %p87
    %p90 = scmp.ne.s32.totalorder %s75, %s89
    %p91 = scmp.eq.s32.totalorder %s23, 0
    %p92 = por %p90, %p91
    %s94 = sadd.s32 %s93, 1
    %p97 = scmp.eq.s32.totalorder %s17, 1
    %p98 = scmp.ne.s32.totalorder %s93, %s95
    %p99 = scmp.eq.s32.totalorder %s17, 0
    %p100 = por %p98, %p99
    %p101 = scmp.ne.s32.totalorder %s93, %s95
    %p102 = scmp.eq.s32.totalorder %s22, 1
    %p103 = por %p101, %p102
    %p104 = scmp.ne.s32.totalorder %s95, %s96
    %p105 = scmp.eq.s32.totalorder %s22, 0
    %p106 = por %p104, %p105
    %p107 = scmp.ne.s32.totalorder %s95, %s96
    %p108 = scmp.eq.s32.totalorder %s23, 1
    %p109 = por %p107, %p108
    %p111 = scmp.ne.s32.totalorder %s96, %s110
    %p112 = scmp.eq.s32.totalorder %s23, 0
    %p113 = por %p111, %p112
    %s115 = sadd.s32 %s114, 1
    %p118 = scmp.eq.s32.totalorder %s17, 1
    %p119 = scmp.ne.s32.totalorder %s114, %s116
    %p120 = scmp.eq.s32.totalorder %s17, 0
    %p121 = por %p119, %p120
    %p122 = scmp.ne.s32.totalorder %s114, %s116
    %p123 = scmp.eq.s32.totalorder %s22, 1
    %p124 = por %p122, %p123
    %p125 = scmp.ne.s32.totalorder %s116, %s117
    %p126 = scmp.eq.s32.totalorder %s22, 0
    %p127 = por %p125, %p126
    %p128 = scmp.ne.s32.totalorder %s116, %s117
    %p129 = scmp.eq.s32.totalorder %s23, 1
    %p130 = por %p128, %p129
    %p132 = scmp.ne.s32.totalorder %s117, %s131
    %p133 = scmp.eq.s32.totalorder %s23, 0
    %p134 = por %p132, %p133
    %s136 = sadd.s32 %s135, 1
    %p139 = scmp.eq.s32.totalorder %s17, 1
    %p140 = scmp.ne.s32.totalorder %s135, %s137
    %p141 = scmp.eq.s32.totalorder %s17, 0
    %p142 = por %p140, %p141
    %p143 = scmp.ne.s32.totalorder %s135, %s137
    %p144 = scmp.eq.s32.totalorder %s22, 1
    %p145 = por %p143, %p144
    %p146 = scmp.ne.s32.totalorder %s137, %s138
    %p147 = scmp.eq.s32.totalorder %s22, 0
    %p148 = por %p146, %p147
    %p149 = scmp.ne.s32.totalorder %s137, %s138
    %p150 = scmp.eq.s32.totalorder %s23, 1
    %p151 = por %p149, %p150
    %p153 = scmp.ne.s32.totalorder %s138, %s152
    %p154 = scmp.eq.s32.totalorder %s23, 0
    %p155 = por %p153, %p154
    %s157 = sadd.s32 %s156, 1
    %p160 = scmp.eq.s32.totalorder %s17, 1
    %p161 = scmp.ne.s32.totalorder %s156, %s158
    %p162 = scmp.eq.s32.totalorder %s17, 0
    %p163 = por %p161, %p162
    %p164 = scmp.ne.s32.totalorder %s156, %s158
    %p165 = scmp.eq.s32.totalorder %s22, 1
    %p166 = por %p164, %p165
    %p167 = scmp.ne.s32.totalorder %s158, %s159
    %p168 = scmp.eq.s32.totalorder %s22, 0
    %p169 = por %p167, %p168
    %p170 = scmp.ne.s32.totalorder %s158, %s159
    %p171 = scmp.eq.s32.totalorder %s23, 1
    %p172 = por %p170, %p171
    %p174 = scmp.ne.s32.totalorder %s159, %s173
    %p175 = scmp.eq.s32.totalorder %s23, 0
    %p176 = por %p174, %p175
    %s178 = sadd.s32 %s177, 1
    %p181 = scmp.eq.s32.totalorder %s17, 1
    %p182 = scmp.ne.s32.totalorder %s177, %s179
    %p183 = scmp.eq.s32.totalorder %s17, 0
    %p184 = por %p182, %p183
    %p185 = scmp.ne.s32.totalorder %s177, %s179
    %p186 = scmp.eq.s32.totalorder %s22, 1
    %p187 = por %p185, %p186
    %p188 = scmp.ne.s32.totalorder %s179, %s180
    %p189 = scmp.eq.s32.totalorder %s22, 0
    %p190 = por %p188, %p189
    %p191 = scmp.ne.s32.totalorder %s179, %s180
    %p192 = scmp.eq.s32.totalorder %s23, 1
    %p193 = por %p191, %p192
    %p195 = scmp.ne.s32.totalorder %s180, %s194
    %p196 = scmp.eq.s32.totalorder %s23, 0
    %p197 = por %p195, %p196
    %s199 = sadd.s32 %s198, 1
    %p202 = scmp.eq.s32.totalorder %s17, 1
    %p203 = scmp.ne.s32.totalorder %s198, %s200
    %p204 = scmp.eq.s32.totalorder %s17, 0
    %p205 = por %p203, %p204
    %p206 = scmp.ne.s32.totalorder %s198, %s200
    %p207 = scmp.eq.s32.totalorder %s22, 1
    %p208 = por %p206, %p207
    %p209 = scmp.ne.s32.totalorder %s200, %s201
    %p210 = scmp.eq.s32.totalorder %s22, 0
    %p211 = por %p209, %p210
    %p212 = scmp.ne.s32.totalorder %s200, %s201
    %p213 = scmp.eq.s32.totalorder %s23, 1
    %p214 = por %p212, %p213
    %p216 = scmp.ne.s32.totalorder %s201, %s215
    %p217 = scmp.eq.s32.totalorder %s23, 0
    %p218 = por %p216, %p217
    %s220 = sadd.s32 %s219, 1
    %p223 = scmp.eq.s32.totalorder %s17, 1
    %p224 = scmp.ne.s32.totalorder %s219, %s221
    %p225 = scmp.eq.s32.totalorder %s17, 0
    %p226 = por %p224, %p225
    %p227 = scmp.ne.s32.totalorder %s219, %s221
    %p228 = scmp.eq.s32.totalorder %s22, 1
    %p229 = por %p227, %p228
    %p230 = scmp.ne.s32.totalorder %s221, %s222
    %p231 = scmp.eq.s32.totalorder %s22, 0
    %p232 = por %p230, %p231
    %p233 = scmp.ne.s32.totalorder %s221, %s222
    %p234 = scmp.eq.s32.totalorder %s23, 1
    %p235 = por %p233, %p234
    %p237 = scmp.ne.s32.totalorder %s222, %s236
    %p238 = scmp.eq.s32.totalorder %s23, 0
    %p239 = por %p237, %p238
    %s241 = sadd.s32 %s240, 1
    %p244 = scmp.eq.s32.totalorder %s17, 1
    %p245 = scmp.ne.s32.totalorder %s240, %s242
    %p246 = scmp.eq.s32.totalorder %s17, 0
    %p247 = por %p245, %p246
    %p248 = scmp.ne.s32.totalorder %s240, %s242
    %p249 = scmp.eq.s32.totalorder %s22, 1
    %p250 = por %p248, %p249
    %p251 = scmp.ne.s32.totalorder %s242, %s243
    %p252 = scmp.eq.s32.totalorder %s22, 0
    %p253 = por %p251, %p252
    %p254 = scmp.ne.s32.totalorder %s242, %s243
    %p255 = scmp.eq.s32.totalorder %s23, 1
    %p256 = por %p254, %p255
    %p258 = scmp.ne.s32.totalorder %s243, %s257
    %p259 = scmp.eq.s32.totalorder %s23, 0
    %p260 = por %p258, %p259
    %s261 = ssub.s32 %s17, %s24
    %p262 = scmp.eq.s32.totalorder %s261, 0
    %s264 = sadd.s32 %s263, 1
    %s265 = scalar_select %p262, %s263, %s264
    %p268 = pneg %p262
    %p269 = scmp.eq.s32.totalorder %s17, 1
    %p270 = por %p268, %p269
    %p271 = scmp.ne.s32.totalorder %s263, %s266
    %p272 = scmp.eq.s32.totalorder %s17, 0
    %p273 = por %p271, %p272
    %p274 = scmp.ne.s32.totalorder %s263, %s266
    %p275 = scmp.eq.s32.totalorder %s22, 1
    %p276 = por %p274, %p275
    %p277 = scmp.ne.s32.totalorder %s266, %s267
    %p278 = scmp.eq.s32.totalorder %s22, 0
    %p279 = por %p277, %p278
    %p280 = scmp.ne.s32.totalorder %s266, %s267
    %p281 = scmp.eq.s32.totalorder %s23, 1
    %p282 = por %p280, %p281
    %p284 = scmp.ne.s32.totalorder %s267, %s283
    %p285 = scmp.eq.s32.totalorder %s23, 0
    %p286 = por %p284, %p285
    %p287 = scmp.le.s32.totalorder 1, %s17
    %p288 = scmp.lt.s32.totalorder %s17, 3
    %p289 = pnand %p287, %p288
    %p290 = pneg %p289
    // Predicated region
    $region9: #{tpu_custom_call.1} parent=5 // pred_check
      _
    $region10: #{tpu_custom_call.1} parent=5 // pred_check_branch
      %292 = sbr.rel (%p289) target = $region12
    $region11: #{tpu_custom_call.1} parent=5 // pred_region
      %s293 = ssub.s32 %s17, 1
      // Predicated region
      $region13: #{tpu_custom_call.1} parent=11 // pred_check
        %p294 = pneg %p64
      $region14: #{tpu_custom_call.1} parent=11 // pred_check_branch
        %296 = sbr.rel (%p294) target = $region16
      $region15: #{tpu_custom_call.1} parent=11 // pred_region
        _
      $region16: #{tpu_custom_call.1} parent=11 // pred_fallthru
        _
      // Predicated region
      $region17: #{tpu_custom_call.1} parent=11 // pred_check
        %p297 = pneg %p85
      $region18: #{tpu_custom_call.1} parent=11 // pred_check_branch
        %299 = sbr.rel (%p297) target = $region20
      $region19: #{tpu_custom_call.1} parent=11 // pred_region
        _
      $region20: #{tpu_custom_call.1} parent=11 // pred_fallthru
        _
      // Predicated region
      $region21: #{tpu_custom_call.1} parent=11 // pred_check
        %p300 = pneg %p106
      $region22: #{tpu_custom_call.1} parent=11 // pred_check_branch
        %302 = sbr.rel (%p300) target = $region24
      $region23: #{tpu_custom_call.1} parent=11 // pred_region
        _
      $region24: #{tpu_custom_call.1} parent=11 // pred_fallthru
        _
      // Predicated region
      $region25: #{tpu_custom_call.1} parent=11 // pred_check
        %p303 = pneg %p127
      $region26: #{tpu_custom_call.1} parent=11 // pred_check_branch
        %305 = sbr.rel (%p303) target = $region28
      $region27: #{tpu_custom_call.1} parent=11 // pred_region
        _
      $region28: #{tpu_custom_call.1} parent=11 // pred_fallthru
        _
      // Predicated region
      $region29: #{tpu_custom_call.1} parent=11 // pred_check
        %p306 = pneg %p148
      $region30: #{tpu_custom_call.1} parent=11 // pred_check_branch
        %308 = sbr.rel (%p306) target = $region32
      $region31: #{tpu_custom_call.1} parent=11 // pred_region
        _
      $region32: #{tpu_custom_call.1} parent=11 // pred_fallthru
        _
      // Predicated region
      $region33: #{tpu_custom_call.1} parent=11 // pred_check
        %p309 = pneg %p169
      $region34: #{tpu_custom_call.1} parent=11 // pred_check_branch
        %311 = sbr.rel (%p309) target = $region36
      $region35: #{tpu_custom_call.1} parent=11 // pred_region
        _
      $region36: #{tpu_custom_call.1} parent=11 // pred_fallthru
        _
      // Predicated region
      $region37: #{tpu_custom_call.1} parent=11 // pred_check
        %p312 = pneg %p190
      $region38: #{tpu_custom_call.1} parent=11 // pred_check_branch
        %314 = sbr.rel (%p312) target = $region40
      $region39: #{tpu_custom_call.1} parent=11 // pred_region
        _
      $region40: #{tpu_custom_call.1} parent=11 // pred_fallthru
        _
      // Predicated region
      $region41: #{tpu_custom_call.1} parent=11 // pred_check
        %p315 = pneg %p211
      $region42: #{tpu_custom_call.1} parent=11 // pred_check_branch
        %317 = sbr.rel (%p315) target = $region44
      $region43: #{tpu_custom_call.1} parent=11 // pred_region
        _
      $region44: #{tpu_custom_call.1} parent=11 // pred_fallthru
        _
      // Predicated region
      $region45: #{tpu_custom_call.1} parent=11 // pred_check
        %p318 = pneg %p232
      $region46: #{tpu_custom_call.1} parent=11 // pred_check_branch
        %320 = sbr.rel (%p318) target = $region48
      $region47: #{tpu_custom_call.1} parent=11 // pred_region
        _
      $region48: #{tpu_custom_call.1} parent=11 // pred_fallthru
        _
      // Predicated region
      $region49: #{tpu_custom_call.1} parent=11 // pred_check
        %p321 = pneg %p253
      $region50: #{tpu_custom_call.1} parent=11 // pred_check_branch
        %323 = sbr.rel (%p321) target = $region52
      $region51: #{tpu_custom_call.1} parent=11 // pred_region
        _
      $region52: #{tpu_custom_call.1} parent=11 // pred_fallthru
        _
    $region12: #{tpu_custom_call.1} parent=5 // pred_fallthru
      _
    %p324 = scmp.lt.s32.totalorder %s17, 2
    // Predicated region
    $region53: #{tpu_custom_call.1} parent=5 // pred_check
      %p325 = pneg %p324
    $region54: #{tpu_custom_call.1} parent=5 // pred_check_branch
      %327 = sbr.rel (%p325) target = $region56
    $region55: #{tpu_custom_call.1} parent=5 // pred_region
      // Predicated region
      $region57: #{tpu_custom_call.1} parent=55 // pred_check
        %p328 = pneg %p37
      $region58: #{tpu_custom_call.1} parent=55 // pred_check_branch
        %330 = sbr.rel (%p328) target = $region60
      $region59: #{tpu_custom_call.1} parent=55 // pred_region
        %s331 = smul.u32 16, %s17
        %p332 = scmp.lt.s32.totalorder %s331, 31
        %s333 = scalar_select %p332, %s331, 31
        %s334 = smul.addr %s333, 8
        %s335 = scalar_lea.vmem %s0, %s334
        %s336 = smul.u32 16, %s17
      $region60: #{tpu_custom_call.1} parent=55 // pred_fallthru
        _
    $region56: #{tpu_custom_call.1} parent=5 // pred_fallthru
      _
    %p337 = scmp.le.s32.totalorder 1, %s17
    %p338 = scmp.lt.s32.totalorder %s17, 3
    %p339 = pnand %p337, %p338
    %p340 = pneg %p339
    // Predicated region
    $region61: #{tpu_custom_call.1} parent=5 // pred_check
      _
    $region62: #{tpu_custom_call.1} parent=5 // pred_check_branch
      %342 = sbr.rel (%p339) target = $region64
    $region63: #{tpu_custom_call.1} parent=5 // pred_region
      %s343 = ssub.s32 %s17, 1
      %s344 = smul.u32 16, %s22
      %p345 = scmp.lt.s32.totalorder %s344, 31
      %s346 = scalar_select %p345, %s344, 31
      %s347 = smul.addr %s346, 8
      %s348 = scalar_lea.vmem %s0, %s347
      %p349 = pneg %p43
      %p350 = pneg %p40
      %p351 = pneg %p64
      %p352 = pneg %p61
      %p353 = pneg %p85
      %p354 = pneg %p82
      %p355 = pneg %p106
      %p356 = pneg %p103
      %p357 = pneg %p127
      %p358 = pneg %p124
      %p359 = pneg %p148
      %p360 = pneg %p145
      %p361 = pneg %p169
      %p362 = pneg %p166
      %p363 = pneg %p190
      %p364 = pneg %p187
      %p365 = pneg %p211
      %p366 = pneg %p208
      %p367 = pneg %p232
      %p368 = pneg %p229
      %p369 = pneg %p253
      %p370 = pneg %p250
      %p371 = pneg %p279
      %p372 = pneg %p276
      %s373 = smul.u32 16, %s22
      %p374 = scmp.lt.s32.totalorder %s373, 31
      %s375 = scalar_select %p374, %s373, 31
      %s376 = smul.addr %s375, 8
      %s377 = scalar_lea.vmem %s11, %s376
      %s378 = smul.u32 16, %s22
      %p379 = scmp.lt.s32.totalorder %s378, 31
      %s380 = scalar_select %p379, %s378, 31
      %s381 = smul.addr %s380, 8
      %s382 = scalar_lea.vmem %s0, %s381
      %s383 = smul.u32 16, %s22
      %s384 = smul.u32 16, %s22
      %p385 = scmp.lt.s32.totalorder %s384, 31
      %s386 = scalar_select %p385, %s384, 31
      %s387 = smul.addr %s386, 8
      %s388 = scalar_lea.vmem %s11, %s387
      %s389 = smul.u32 16, %s22
      %v390 = vld [vmem:[%s382] sm:$0xff]
      %v391 = vld [vmem:[%s382 + $0x8] sm:$0xff]
      %v392 = vld [vmem:[%s382 + $0x10] sm:$0xff]
      %v393 = vld [vmem:[%s382 + $0x18] sm:$0xff]
      %v394 = vld [vmem:[%s382 + $0x20] sm:$0xff]
      %v395 = vld [vmem:[%s382 + $0x28] sm:$0xff]
      %v396 = vld [vmem:[%s382 + $0x30] sm:$0xff]
      %v397 = vld [vmem:[%s382 + $0x38] sm:$0xff]
      %v398 = vld [vmem:[%s382 + $0x40] sm:$0xff]
      %v399 = vld [vmem:[%s382 + $0x48] sm:$0xff]
      %v400 = vld [vmem:[%s382 + $0x50] sm:$0xff]
      %v401 = vld [vmem:[%s382 + $0x58] sm:$0xff]
      %v402 = vld [vmem:[%s382 + $0x60] sm:$0xff]
      %v403 = vld [vmem:[%s382 + $0x68] sm:$0xff]
      %v404 = vld [vmem:[%s382 + $0x70] sm:$0xff]
      %v405 = vld [vmem:[%s382 + $0x78] sm:$0xff]
      %v406 = vld [vmem:[%s1] sm:$0xf]
      %v407 = vld [vmem:[%s2] sm:$0x1]
      %v409 = vlaneseq
      %v410 = vshrl.u32 %v409, 7
      %v411 = vsub.s32 0, %v410
      %v412 = vrot.slane %v407, %v411
      %vm414 = vcmask 31744
      %v416 = vsel %vm414, %v390, 0
      %v419 = vsel %vm414, %v391, 0
      %v422 = vsel %vm414, %v392, 0
      %v425 = vsel %vm414, %v393, 0
      %v428 = vsel %vm414, %v394, 0
      %v431 = vsel %vm414, %v395, 0
      %v434 = vsel %vm414, %v396, 0
      %v437 = vsel %vm414, %v397, 0
      %v440 = vsel %vm414, %v398, 0
      %v443 = vsel %vm414, %v399, 0
      %v446 = vsel %vm414, %v400, 0
      %v449 = vsel %vm414, %v401, 0
      %v452 = vsel %vm414, %v402, 0
      %v455 = vsel %vm414, %v403, 0
      %v458 = vsel %vm414, %v404, 0
      %v461 = vsel %vm414, %v405, 0
      %vm463 = vcmask 1043456
      %v465 = vsel %vm463, %v406, 0
      %467 = vmatprep.subr.mxu0 0.0
      %468 = vmatpush1.msra.mxu0 0.0
      %469 = vmatprep.subr.mxu0 0.0
      %470 = vmatpush1.msra.mxu0 0.0
      %471 = vmatprep.subr.mxu0 0.0
      %472 = vmatpush1.msra.mxu0 0.0
      %473 = vmatprep.subr.mxu0 0.0
      %474 = vmatpush1.msra.mxu0 0.0
      %475 = vmatprep.subr.mxu0 0.0
      %476 = vmatpush1.msra.mxu0 0.0
      %477 = vmatprep.subr.mxu0 0.0
      %478 = vmatpush1.msra.mxu0 0.0
      %479 = vmatprep.subr.mxu0 0.0
      %480 = vmatpush1.msra.mxu0 0.0
      %481 = vmatprep.subr.mxu0 0.0
      %482 = vmatpush1.msra.mxu0 0.0
      %483 = vmatprep.subr.mxu0 0.0
      %484 = vmatpush1.msra.mxu0 0.0
      %485 = vmatprep.subr.mxu0 0.0
      %486 = vmatpush1.msra.mxu0 0.0
      %487 = vmatprep.subr.mxu0 0.0
      %488 = vmatpush1.msra.mxu0 0.0
      %489 = vmatprep.subr.mxu0 0.0
      %490 = vmatpush1.msra.mxu0 0.0
      %491 = vmatprep.subr.mxu0 0.0
      %492 = vmatpush1.msra.mxu0 0.0
      %493 = vmatprep.subr.mxu0 0.0
      %494 = vmatpush1.msra.mxu0 0.0
      %495 = vmatprep.subr.mxu0 0.0
      %496 = vmatpush1.msra.mxu0 0.0
      %497 = vmatprep.subr.mxu0 0.0
      %498 = vmatpush1.msra.mxu0 %v465
      %499 = vmatprep.subr.mxu0 0.0
      %500 = vmatpush2.msra.mxu0 0.0
      %501 = vmatprep.subr.mxu0 0.0
      %502 = vmatpush2.msra.mxu0 0.0
      %503 = vmatprep.subr.mxu0 0.0
      %504 = vmatpush2.msra.mxu0 0.0
      %505 = vmatprep.subr.mxu0 0.0
      %506 = vmatpush2.msra.mxu0 0.0
      %507 = vmatprep.subr.mxu0 0.0
      %508 = vmatpush2.msra.mxu0 0.0
      %509 = vmatprep.subr.mxu0 0.0
      %510 = vmatpush2.msra.mxu0 0.0
      %511 = vmatprep.subr.mxu0 0.0
      %512 = vmatpush2.msra.mxu0 0.0
      %513 = vmatprep.subr.mxu0 0.0
      %514 = vmatpush2.msra.mxu0 0.0
      %515 = vmatprep.subr.mxu0 0.0
      %516 = vmatpush2.msra.mxu0 0.0
      %517 = vmatprep.subr.mxu0 0.0
      %518 = vmatpush2.msra.mxu0 0.0
      %519 = vmatprep.subr.mxu0 0.0
      %520 = vmatpush2.msra.mxu0 0.0
      %521 = vmatprep.subr.mxu0 0.0
      %522 = vmatpush2.msra.mxu0 0.0
      %523 = vmatprep.subr.mxu0 0.0
      %524 = vmatpush2.msra.mxu0 0.0
      %525 = vmatprep.subr.mxu0 0.0
      %526 = vmatpush2.msra.mxu0 0.0
      %527 = vmatprep.subr.mxu0 0.0
      %528 = vmatpush2.msra.mxu0 0.0
      %529 = vmatprep.subr.mxu0 0.0
      %530 = vmatpush2.msra.mxu0 0.0
      %531 = vmatprep.mubr.f32.mxu0 0.0
      %532 = vmatmul.mubr.f32.gmra.mxu0 %v416
      %v533 = vpop.f32.mrf.mxu0
      %v534 = vadd.f32 %v412, %v533
      %v535 = vpop.f32.mrf.mxu0
      %536 = vmatprep.mubr.f32.mxu0 0.0
      %537 = vmatmul.mubr.f32.gmra.mxu0 %v419
      %v538 = vpop.f32.mrf.mxu0
      %v539 = vadd.f32 %v412, %v538
      %v540 = vpop.f32.mrf.mxu0
      %541 = vmatprep.mubr.f32.mxu0 0.0
      %542 = vmatmul.mubr.f32.gmra.mxu0 %v422
      %v543 = vpop.f32.mrf.mxu0
      %v544 = vadd.f32 %v412, %v543
      %v545 = vpop.f32.mrf.mxu0
      %546 = vmatprep.mubr.f32.mxu0 0.0
      %547 = vmatmul.mubr.f32.gmra.mxu0 %v425
      %v548 = vpop.f32.mrf.mxu0
      %v549 = vadd.f32 %v412, %v548
      %v550 = vpop.f32.mrf.mxu0
      %551 = vmatprep.mubr.f32.mxu0 0.0
      %552 = vmatmul.mubr.f32.gmra.mxu0 %v428
      %v553 = vpop.f32.mrf.mxu0
      %v554 = vadd.f32 %v412, %v553
      %v555 = vpop.f32.mrf.mxu0
      %556 = vmatprep.mubr.f32.mxu0 0.0
      %557 = vmatmul.mubr.f32.gmra.mxu0 %v431
      %v558 = vpop.f32.mrf.mxu0
      %v559 = vadd.f32 %v412, %v558
      %v560 = vpop.f32.mrf.mxu0
      %561 = vmatprep.mubr.f32.mxu0 0.0
      %562 = vmatmul.mubr.f32.gmra.mxu0 %v434
      %v563 = vpop.f32.mrf.mxu0
      %v564 = vadd.f32 %v412, %v563
      %v565 = vpop.f32.mrf.mxu0
      %566 = vmatprep.mubr.f32.mxu0 0.0
      %567 = vmatmul.mubr.f32.gmra.mxu0 %v437
      %v568 = vpop.f32.mrf.mxu0
      %v569 = vadd.f32 %v412, %v568
      %v570 = vpop.f32.mrf.mxu0
      %571 = vmatprep.mubr.f32.mxu0 0.0
      %572 = vmatmul.mubr.f32.gmra.mxu0 %v440
      %v573 = vpop.f32.mrf.mxu0
      %v574 = vadd.f32 %v412, %v573
      %v575 = vpop.f32.mrf.mxu0
      %576 = vmatprep.mubr.f32.mxu0 0.0
      %577 = vmatmul.mubr.f32.gmra.mxu0 %v443
      %v578 = vpop.f32.mrf.mxu0
      %v579 = vadd.f32 %v412, %v578
      %v580 = vpop.f32.mrf.mxu0
      %581 = vmatprep.mubr.f32.mxu0 0.0
      %582 = vmatmul.mubr.f32.gmra.mxu0 %v446
      %v583 = vpop.f32.mrf.mxu0
      %v584 = vadd.f32 %v412, %v583
      %v585 = vpop.f32.mrf.mxu0
      %586 = vmatprep.mubr.f32.mxu0 0.0
      %587 = vmatmul.mubr.f32.gmra.mxu0 %v449
      %v588 = vpop.f32.mrf.mxu0
      %v589 = vadd.f32 %v412, %v588
      %v590 = vpop.f32.mrf.mxu0
      %591 = vmatprep.mubr.f32.mxu0 0.0
      %592 = vmatmul.mubr.f32.gmra.mxu0 %v452
      %v593 = vpop.f32.mrf.mxu0
      %v594 = vadd.f32 %v412, %v593
      %v595 = vpop.f32.mrf.mxu0
      %596 = vmatprep.mubr.f32.mxu0 0.0
      %597 = vmatmul.mubr.f32.gmra.mxu0 %v455
      %v598 = vpop.f32.mrf.mxu0
      %v599 = vadd.f32 %v412, %v598
      %v600 = vpop.f32.mrf.mxu0
      %601 = vmatprep.mubr.f32.mxu0 0.0
      %602 = vmatmul.mubr.f32.gmra.mxu0 %v458
      %v603 = vpop.f32.mrf.mxu0
      %v604 = vadd.f32 %v412, %v603
      %v605 = vpop.f32.mrf.mxu0
      %606 = vmatprep.mubr.f32.mxu0 0.0
      %607 = vmatmul.mubr.f32.gmra.mxu0 %v461
      %v608 = vpop.f32.mrf.mxu0
      %v609 = vadd.f32 %v412, %v608
      %v610 = vpop.f32.mrf.mxu0
      %611 = vdwg.mxu0
      %v612 = vtanh.pop %v534
      %v613 = vtanh.pop %v539
      %v614 = vtanh.pop %v544
      %v615 = vtanh.pop %v549
      %v616 = vtanh.pop %v554
      %v617 = vtanh.pop %v559
      %v618 = vtanh.pop %v564
      %v619 = vtanh.pop %v569
      %v620 = vtanh.pop %v574
      %v621 = vtanh.pop %v579
      %v622 = vtanh.pop %v584
      %v623 = vtanh.pop %v589
      %v624 = vtanh.pop %v594
      %v625 = vtanh.pop %v599
      %v626 = vtanh.pop %v604
      %v627 = vtanh.pop %v609
      %v628 = vld [vmem:[%s3] sm:$0xff]
      %v629 = vld [vmem:[%s3 + $0x8] sm:$0xff]
      %v630 = vld [vmem:[%s3 + $0x10] sm:$0xff]
      %v631 = vld [vmem:[%s3 + $0x18] sm:$0xff]
      %v632 = vld [vmem:[%s4] sm:$0x1]
      %v634 = vlaneseq
      %v635 = vshrl.u32 %v634, 7
      %v636 = vsub.s32 0, %v635
      %v637 = vrot.slane %v632, %v636
      %vm639 = vcmask 261120
      %v641 = vsel %vm639, %v612, 0
      %v644 = vsel %vm639, %v613, 0
      %v647 = vsel %vm639, %v614, 0
      %v650 = vsel %vm639, %v615, 0
      %v653 = vsel %vm639, %v616, 0
      %v656 = vsel %vm639, %v617, 0
      %v659 = vsel %vm639, %v618, 0
      %v662 = vsel %vm639, %v619, 0
      %v665 = vsel %vm639, %v620, 0
      %v668 = vsel %vm639, %v621, 0
      %v671 = vsel %vm639, %v622, 0
      %v674 = vsel %vm639, %v623, 0
      %v677 = vsel %vm639, %v624, 0
      %v680 = vsel %vm639, %v625, 0
      %v683 = vsel %vm639, %v626, 0
      %v686 = vsel %vm639, %v627, 0
      %688 = vmatprep.subr.mxu0 0.0
      %689 = vmatpush1.msra.mxu0 0.0
      %690 = vmatprep.subr.mxu0 0.0
      %691 = vmatpush1.msra.mxu0 0.0
      %692 = vmatprep.subr.mxu0 0.0
      %693 = vmatpush1.msra.mxu0 0.0
      %694 = vmatprep.subr.mxu0 0.0
      %695 = vmatpush1.msra.mxu0 0.0
      %696 = vmatprep.subr.mxu0 0.0
      %697 = vmatpush1.msra.mxu0 0.0
      %698 = vmatprep.subr.mxu0 0.0
      %699 = vmatpush1.msra.mxu0 0.0
      %700 = vmatprep.subr.mxu0 0.0
      %701 = vmatpush1.msra.mxu0 0.0
      %702 = vmatprep.subr.mxu0 0.0
      %703 = vmatpush1.msra.mxu0 0.0
      %704 = vmatprep.subr.mxu0 0.0
      %705 = vmatpush1.msra.mxu0 0.0
      %706 = vmatprep.subr.mxu0 0.0
      %707 = vmatpush1.msra.mxu0 0.0
      %708 = vmatprep.subr.mxu0 0.0
      %709 = vmatpush1.msra.mxu0 0.0
      %710 = vmatprep.subr.mxu0 0.0
      %711 = vmatpush1.msra.mxu0 0.0
      %712 = vmatprep.subr.mxu0 0.0
      %713 = vmatpush1.msra.mxu0 %v631
      %714 = vmatprep.subr.mxu0 0.0
      %715 = vmatpush1.msra.mxu0 %v630
      %716 = vmatprep.subr.mxu0 0.0
      %717 = vmatpush1.msra.mxu0 %v629
      %718 = vmatprep.subr.mxu0 0.0
      %719 = vmatpush1.msra.mxu0 %v628
      %720 = vmatprep.subr.mxu0 0.0
      %721 = vmatpush2.msra.mxu0 0.0
      %722 = vmatprep.subr.mxu0 0.0
      %723 = vmatpush2.msra.mxu0 0.0
      %724 = vmatprep.subr.mxu0 0.0
      %725 = vmatpush2.msra.mxu0 0.0
      %726 = vmatprep.subr.mxu0 0.0
      %727 = vmatpush2.msra.mxu0 0.0
      %728 = vmatprep.subr.mxu0 0.0
      %729 = vmatpush2.msra.mxu0 0.0
      %730 = vmatprep.subr.mxu0 0.0
      %731 = vmatpush2.msra.mxu0 0.0
      %732 = vmatprep.subr.mxu0 0.0
      %733 = vmatpush2.msra.mxu0 0.0
      %734 = vmatprep.subr.mxu0 0.0
      %735 = vmatpush2.msra.mxu0 0.0
      %736 = vmatprep.subr.mxu0 0.0
      %737 = vmatpush2.msra.mxu0 0.0
      %738 = vmatprep.subr.mxu0 0.0
      %739 = vmatpush2.msra.mxu0 0.0
      %740 = vmatprep.subr.mxu0 0.0
      %741 = vmatpush2.msra.mxu0 0.0
      %742 = vmatprep.subr.mxu0 0.0
      %743 = vmatpush2.msra.mxu0 0.0
      %744 = vmatprep.subr.mxu0 0.0
      %745 = vmatpush2.msra.mxu0 0.0
      %746 = vmatprep.subr.mxu0 0.0
      %747 = vmatpush2.msra.mxu0 0.0
      %748 = vmatprep.subr.mxu0 0.0
      %749 = vmatpush2.msra.mxu0 0.0
      %750 = vmatprep.subr.mxu0 0.0
      %751 = vmatpush2.msra.mxu0 0.0
      %752 = vmatprep.mubr.f32.mxu0 0.0
      %753 = vmatmul.mubr.f32.gmra.mxu0 %v641
      %v754 = vpop.f32.mrf.mxu0
      %v755 = vadd.f32 %v637, %v754
      %v756 = vpop.f32.mrf.mxu0
      %757 = vmatprep.mubr.f32.mxu0 0.0
      %758 = vmatmul.mubr.f32.gmra.mxu0 %v644
      %v759 = vpop.f32.mrf.mxu0
      %v760 = vadd.f32 %v637, %v759
      %v761 = vpop.f32.mrf.mxu0
      %762 = vmatprep.mubr.f32.mxu0 0.0
      %763 = vmatmul.mubr.f32.gmra.mxu0 %v647
      %v764 = vpop.f32.mrf.mxu0
      %v765 = vadd.f32 %v637, %v764
      %v766 = vpop.f32.mrf.mxu0
      %767 = vmatprep.mubr.f32.mxu0 0.0
      %768 = vmatmul.mubr.f32.gmra.mxu0 %v650
      %v769 = vpop.f32.mrf.mxu0
      %v770 = vadd.f32 %v637, %v769
      %v771 = vpop.f32.mrf.mxu0
      %772 = vmatprep.mubr.f32.mxu0 0.0
      %773 = vmatmul.mubr.f32.gmra.mxu0 %v653
      %v774 = vpop.f32.mrf.mxu0
      %v775 = vadd.f32 %v637, %v774
      %v776 = vpop.f32.mrf.mxu0
      %777 = vmatprep.mubr.f32.mxu0 0.0
      %778 = vmatmul.mubr.f32.gmra.mxu0 %v656
      %v779 = vpop.f32.mrf.mxu0
      %v780 = vadd.f32 %v637, %v779
      %v781 = vpop.f32.mrf.mxu0
      %782 = vmatprep.mubr.f32.mxu0 0.0
      %783 = vmatmul.mubr.f32.gmra.mxu0 %v659
      %v784 = vpop.f32.mrf.mxu0
      %v785 = vadd.f32 %v637, %v784
      %v786 = vpop.f32.mrf.mxu0
      %787 = vmatprep.mubr.f32.mxu0 0.0
      %788 = vmatmul.mubr.f32.gmra.mxu0 %v662
      %v789 = vpop.f32.mrf.mxu0
      %v790 = vadd.f32 %v637, %v789
      %v791 = vpop.f32.mrf.mxu0
      %792 = vmatprep.mubr.f32.mxu0 0.0
      %793 = vmatmul.mubr.f32.gmra.mxu0 %v665
      %v794 = vpop.f32.mrf.mxu0
      %v795 = vadd.f32 %v637, %v794
      %v796 = vpop.f32.mrf.mxu0
      %797 = vmatprep.mubr.f32.mxu0 0.0
      %798 = vmatmul.mubr.f32.gmra.mxu0 %v668
      %v799 = vpop.f32.mrf.mxu0
      %v800 = vadd.f32 %v637, %v799
      %v801 = vpop.f32.mrf.mxu0
      %802 = vmatprep.mubr.f32.mxu0 0.0
      %803 = vmatmul.mubr.f32.gmra.mxu0 %v671
      %v804 = vpop.f32.mrf.mxu0
      %v805 = vadd.f32 %v637, %v804
      %v806 = vpop.f32.mrf.mxu0
      %807 = vmatprep.mubr.f32.mxu0 0.0
      %808 = vmatmul.mubr.f32.gmra.mxu0 %v674
      %v809 = vpop.f32.mrf.mxu0
      %v810 = vadd.f32 %v637, %v809
      %v811 = vpop.f32.mrf.mxu0
      %812 = vmatprep.mubr.f32.mxu0 0.0
      %813 = vmatmul.mubr.f32.gmra.mxu0 %v677
      %v814 = vpop.f32.mrf.mxu0
      %v815 = vadd.f32 %v637, %v814
      %v816 = vpop.f32.mrf.mxu0
      %817 = vmatprep.mubr.f32.mxu0 0.0
      %818 = vmatmul.mubr.f32.gmra.mxu0 %v680
      %v819 = vpop.f32.mrf.mxu0
      %v820 = vadd.f32 %v637, %v819
      %v821 = vpop.f32.mrf.mxu0
      %822 = vmatprep.mubr.f32.mxu0 0.0
      %823 = vmatmul.mubr.f32.gmra.mxu0 %v683
      %v824 = vpop.f32.mrf.mxu0
      %v825 = vadd.f32 %v637, %v824
      %v826 = vpop.f32.mrf.mxu0
      %827 = vmatprep.mubr.f32.mxu0 0.0
      %828 = vmatmul.mubr.f32.gmra.mxu0 %v686
      %v829 = vpop.f32.mrf.mxu0
      %v830 = vadd.f32 %v637, %v829
      %v831 = vpop.f32.mrf.mxu0
      %832 = vdwg.mxu0
      %v833 = vtanh.pop %v755
      %v834 = vtanh.pop %v760
      %v835 = vtanh.pop %v765
      %v836 = vtanh.pop %v770
      %v837 = vtanh.pop %v775
      %v838 = vtanh.pop %v780
      %v839 = vtanh.pop %v785
      %v840 = vtanh.pop %v790
      %v841 = vtanh.pop %v795
      %v842 = vtanh.pop %v800
      %v843 = vtanh.pop %v805
      %v844 = vtanh.pop %v810
      %v845 = vtanh.pop %v815
      %v846 = vtanh.pop %v820
      %v847 = vtanh.pop %v825
      %v848 = vtanh.pop %v830
      %v849 = vld [vmem:[%s5] sm:$0xff]
      %v850 = vld [vmem:[%s5 + $0x8] sm:$0xff]
      %v851 = vld [vmem:[%s5 + $0x10] sm:$0xff]
      %v852 = vld [vmem:[%s5 + $0x18] sm:$0xff]
      %v853 = vld [vmem:[%s6] sm:$0x1]
      %v855 = vlaneseq
      %v856 = vshrl.u32 %v855, 7
      %v857 = vsub.s32 0, %v856
      %v858 = vrot.slane %v853, %v857
      %v861 = vsel %vm639, %v833, 0
      %v864 = vsel %vm639, %v834, 0
      %v867 = vsel %vm639, %v835, 0
      %v870 = vsel %vm639, %v836, 0
      %v873 = vsel %vm639, %v837, 0
      %v876 = vsel %vm639, %v838, 0
      %v879 = vsel %vm639, %v839, 0
      %v882 = vsel %vm639, %v840, 0
      %v885 = vsel %vm639, %v841, 0
      %v888 = vsel %vm639, %v842, 0
      %v891 = vsel %vm639, %v843, 0
      %v894 = vsel %vm639, %v844, 0
      %v897 = vsel %vm639, %v845, 0
      %v900 = vsel %vm639, %v846, 0
      %v903 = vsel %vm639, %v847, 0
      %v906 = vsel %vm639, %v848, 0
      %908 = vmatprep.subr.mxu0 0.0
      %909 = vmatpush1.msra.mxu0 0.0
      %910 = vmatprep.subr.mxu0 0.0
      %911 = vmatpush1.msra.mxu0 0.0
      %912 = vmatprep.subr.mxu0 0.0
      %913 = vmatpush1.msra.mxu0 0.0
      %914 = vmatprep.subr.mxu0 0.0
      %915 = vmatpush1.msra.mxu0 0.0
      %916 = vmatprep.subr.mxu0 0.0
      %917 = vmatpush1.msra.mxu0 0.0
      %918 = vmatprep.subr.mxu0 0.0
      %919 = vmatpush1.msra.mxu0 0.0
      %920 = vmatprep.subr.mxu0 0.0
      %921 = vmatpush1.msra.mxu0 0.0
      %922 = vmatprep.subr.mxu0 0.0
      %923 = vmatpush1.msra.mxu0 0.0
      %924 = vmatprep.subr.mxu0 0.0
      %925 = vmatpush1.msra.mxu0 0.0
      %926 = vmatprep.subr.mxu0 0.0
      %927 = vmatpush1.msra.mxu0 0.0
      %928 = vmatprep.subr.mxu0 0.0
      %929 = vmatpush1.msra.mxu0 0.0
      %930 = vmatprep.subr.mxu0 0.0
      %931 = vmatpush1.msra.mxu0 0.0
      %932 = vmatprep.subr.mxu0 0.0
      %933 = vmatpush1.msra.mxu0 %v852
      %934 = vmatprep.subr.mxu0 0.0
      %935 = vmatpush1.msra.mxu0 %v851
      %936 = vmatprep.subr.mxu0 0.0
      %937 = vmatpush1.msra.mxu0 %v850
      %938 = vmatprep.subr.mxu0 0.0
      %939 = vmatpush1.msra.mxu0 %v849
      %940 = vmatprep.subr.mxu0 0.0
      %941 = vmatpush2.msra.mxu0 0.0
      %942 = vmatprep.subr.mxu0 0.0
      %943 = vmatpush2.msra.mxu0 0.0
      %944 = vmatprep.subr.mxu0 0.0
      %945 = vmatpush2.msra.mxu0 0.0
      %946 = vmatprep.subr.mxu0 0.0
      %947 = vmatpush2.msra.mxu0 0.0
      %948 = vmatprep.subr.mxu0 0.0
      %949 = vmatpush2.msra.mxu0 0.0
      %950 = vmatprep.subr.mxu0 0.0
      %951 = vmatpush2.msra.mxu0 0.0
      %952 = vmatprep.subr.mxu0 0.0
      %953 = vmatpush2.msra.mxu0 0.0
      %954 = vmatprep.subr.mxu0 0.0
      %955 = vmatpush2.msra.mxu0 0.0
      %956 = vmatprep.subr.mxu0 0.0
      %957 = vmatpush2.msra.mxu0 0.0
      %958 = vmatprep.subr.mxu0 0.0
      %959 = vmatpush2.msra.mxu0 0.0
      %960 = vmatprep.subr.mxu0 0.0
      %961 = vmatpush2.msra.mxu0 0.0
      %962 = vmatprep.subr.mxu0 0.0
      %963 = vmatpush2.msra.mxu0 0.0
      %964 = vmatprep.subr.mxu0 0.0
      %965 = vmatpush2.msra.mxu0 0.0
      %966 = vmatprep.subr.mxu0 0.0
      %967 = vmatpush2.msra.mxu0 0.0
      %968 = vmatprep.subr.mxu0 0.0
      %969 = vmatpush2.msra.mxu0 0.0
      %970 = vmatprep.subr.mxu0 0.0
      %971 = vmatpush2.msra.mxu0 0.0
      %972 = vmatprep.mubr.f32.mxu0 0.0
      %973 = vmatmul.mubr.f32.gmra.mxu0 %v861
      %v974 = vpop.f32.mrf.mxu0
      %v975 = vadd.f32 %v858, %v974
      %v976 = vpop.f32.mrf.mxu0
      %977 = vmatprep.mubr.f32.mxu0 0.0
      %978 = vmatmul.mubr.f32.gmra.mxu0 %v864
      %v979 = vpop.f32.mrf.mxu0
      %v980 = vadd.f32 %v858, %v979
      %v981 = vpop.f32.mrf.mxu0
      %982 = vmatprep.mubr.f32.mxu0 0.0
      %983 = vmatmul.mubr.f32.gmra.mxu0 %v867
      %v984 = vpop.f32.mrf.mxu0
      %v985 = vadd.f32 %v858, %v984
      %v986 = vpop.f32.mrf.mxu0
      %987 = vmatprep.mubr.f32.mxu0 0.0
      %988 = vmatmul.mubr.f32.gmra.mxu0 %v870
      %v989 = vpop.f32.mrf.mxu0
      %v990 = vadd.f32 %v858, %v989
      %v991 = vpop.f32.mrf.mxu0
      %992 = vmatprep.mubr.f32.mxu0 0.0
      %993 = vmatmul.mubr.f32.gmra.mxu0 %v873
      %v994 = vpop.f32.mrf.mxu0
      %v995 = vadd.f32 %v858, %v994
      %v996 = vpop.f32.mrf.mxu0
      %997 = vmatprep.mubr.f32.mxu0 0.0
      %998 = vmatmul.mubr.f32.gmra.mxu0 %v876
      %v999 = vpop.f32.mrf.mxu0
      %v1000 = vadd.f32 %v858, %v999
      %v1001 = vpop.f32.mrf.mxu0
      %1002 = vmatprep.mubr.f32.mxu0 0.0
      %1003 = vmatmul.mubr.f32.gmra.mxu0 %v879
      %v1004 = vpop.f32.mrf.mxu0
      %v1005 = vadd.f32 %v858, %v1004
      %v1006 = vpop.f32.mrf.mxu0
      %1007 = vmatprep.mubr.f32.mxu0 0.0
      %1008 = vmatmul.mubr.f32.gmra.mxu0 %v882
      %v1009 = vpop.f32.mrf.mxu0
      %v1010 = vadd.f32 %v858, %v1009
      %v1011 = vpop.f32.mrf.mxu0
      %1012 = vmatprep.mubr.f32.mxu0 0.0
      %1013 = vmatmul.mubr.f32.gmra.mxu0 %v885
      %v1014 = vpop.f32.mrf.mxu0
      %v1015 = vadd.f32 %v858, %v1014
      %v1016 = vpop.f32.mrf.mxu0
      %1017 = vmatprep.mubr.f32.mxu0 0.0
      %1018 = vmatmul.mubr.f32.gmra.mxu0 %v888
      %v1019 = vpop.f32.mrf.mxu0
      %v1020 = vadd.f32 %v858, %v1019
      %v1021 = vpop.f32.mrf.mxu0
      %1022 = vmatprep.mubr.f32.mxu0 0.0
      %1023 = vmatmul.mubr.f32.gmra.mxu0 %v891
      %v1024 = vpop.f32.mrf.mxu0
      %v1025 = vadd.f32 %v858, %v1024
      %v1026 = vpop.f32.mrf.mxu0
      %1027 = vmatprep.mubr.f32.mxu0 0.0
      %1028 = vmatmul.mubr.f32.gmra.mxu0 %v894
      %v1029 = vpop.f32.mrf.mxu0
      %v1030 = vadd.f32 %v858, %v1029
      %v1031 = vpop.f32.mrf.mxu0
      %1032 = vmatprep.mubr.f32.mxu0 0.0
      %1033 = vmatmul.mubr.f32.gmra.mxu0 %v897
      %v1034 = vpop.f32.mrf.mxu0
      %v1035 = vadd.f32 %v858, %v1034
      %v1036 = vpop.f32.mrf.mxu0
      %1037 = vmatprep.mubr.f32.mxu0 0.0
      %1038 = vmatmul.mubr.f32.gmra.mxu0 %v900
      %v1039 = vpop.f32.mrf.mxu0
      %v1040 = vadd.f32 %v858, %v1039
      %v1041 = vpop.f32.mrf.mxu0
      %1042 = vmatprep.mubr.f32.mxu0 0.0
      %1043 = vmatmul.mubr.f32.gmra.mxu0 %v903
      %v1044 = vpop.f32.mrf.mxu0
      %v1045 = vadd.f32 %v858, %v1044
      %v1046 = vpop.f32.mrf.mxu0
      %1047 = vmatprep.mubr.f32.mxu0 0.0
      %1048 = vmatmul.mubr.f32.gmra.mxu0 %v906
      %v1049 = vpop.f32.mrf.mxu0
      %v1050 = vadd.f32 %v858, %v1049
      %v1051 = vpop.f32.mrf.mxu0
      %1052 = vdwg.mxu0
      %v1053 = vld [vmem:[%s7] sm:$0xff]
      %v1054 = vld [vmem:[%s7 + $0x8] sm:$0xff]
      %v1055 = vld [vmem:[%s7 + $0x10] sm:$0xff]
      %vm1056 = vcmask 195584
      %v1058 = vsel %vm1056, %v975, 0
      %v1061 = vsel %vm1056, %v980, 0
      %v1064 = vsel %vm1056, %v985, 0
      %v1067 = vsel %vm1056, %v990, 0
      %v1070 = vsel %vm1056, %v995, 0
      %v1073 = vsel %vm1056, %v1000, 0
      %v1076 = vsel %vm1056, %v1005, 0
      %v1079 = vsel %vm1056, %v1010, 0
      %v1082 = vsel %vm1056, %v1015, 0
      %v1085 = vsel %vm1056, %v1020, 0
      %v1088 = vsel %vm1056, %v1025, 0
      %v1091 = vsel %vm1056, %v1030, 0
      %v1094 = vsel %vm1056, %v1035, 0
      %v1097 = vsel %vm1056, %v1040, 0
      %v1100 = vsel %vm1056, %v1045, 0
      %v1103 = vsel %vm1056, %v1050, 0
      %1105 = vmatprep.subr.mxu0 0.0
      %1106 = vmatpush1.msra.mxu0 0.0
      %1107 = vmatprep.subr.mxu0 0.0
      %1108 = vmatpush1.msra.mxu0 0.0
      %1109 = vmatprep.subr.mxu0 0.0
      %1110 = vmatpush1.msra.mxu0 0.0
      %1111 = vmatprep.subr.mxu0 0.0
      %1112 = vmatpush1.msra.mxu0 0.0
      %1113 = vmatprep.subr.mxu0 0.0
      %1114 = vmatpush1.msra.mxu0 0.0
      %1115 = vmatprep.subr.mxu0 0.0
      %1116 = vmatpush1.msra.mxu0 0.0
      %1117 = vmatprep.subr.mxu0 0.0
      %1118 = vmatpush1.msra.mxu0 0.0
      %1119 = vmatprep.subr.mxu0 0.0
      %1120 = vmatpush1.msra.mxu0 0.0
      %1121 = vmatprep.subr.mxu0 0.0
      %1122 = vmatpush1.msra.mxu0 0.0
      %1123 = vmatprep.subr.mxu0 0.0
      %1124 = vmatpush1.msra.mxu0 0.0
      %1125 = vmatprep.subr.mxu0 0.0
      %1126 = vmatpush1.msra.mxu0 0.0
      %1127 = vmatprep.subr.mxu0 0.0
      %1128 = vmatpush1.msra.mxu0 0.0
      %1129 = vmatprep.subr.mxu0 0.0
      %1130 = vmatpush1.msra.mxu0 0.0
      %1131 = vmatprep.subr.mxu0 0.0
      %1132 = vmatpush1.msra.mxu0 %v1055
      %1133 = vmatprep.subr.mxu0 0.0
      %1134 = vmatpush1.msra.mxu0 %v1054
      %1135 = vmatprep.subr.mxu0 0.0
      %1136 = vmatpush1.msra.mxu0 %v1053
      %1137 = vmatprep.subr.mxu0 0.0
      %1138 = vmatpush2.msra.mxu0 0.0
      %1139 = vmatprep.subr.mxu0 0.0
      %1140 = vmatpush2.msra.mxu0 0.0
      %1141 = vmatprep.subr.mxu0 0.0
      %1142 = vmatpush2.msra.mxu0 0.0
      %1143 = vmatprep.subr.mxu0 0.0
      %1144 = vmatpush2.msra.mxu0 0.0
      %1145 = vmatprep.subr.mxu0 0.0
      %1146 = vmatpush2.msra.mxu0 0.0
      %1147 = vmatprep.subr.mxu0 0.0
      %1148 = vmatpush2.msra.mxu0 0.0
      %1149 = vmatprep.subr.mxu0 0.0
      %1150 = vmatpush2.msra.mxu0 0.0
      %1151 = vmatprep.subr.mxu0 0.0
      %1152 = vmatpush2.msra.mxu0 0.0
      %1153 = vmatprep.subr.mxu0 0.0
      %1154 = vmatpush2.msra.mxu0 0.0
      %1155 = vmatprep.subr.mxu0 0.0
      %1156 = vmatpush2.msra.mxu0 0.0
      %1157 = vmatprep.subr.mxu0 0.0
      %1158 = vmatpush2.msra.mxu0 0.0
      %1159 = vmatprep.subr.mxu0 0.0
      %1160 = vmatpush2.msra.mxu0 0.0
      %1161 = vmatprep.subr.mxu0 0.0
      %1162 = vmatpush2.msra.mxu0 0.0
      %1163 = vmatprep.subr.mxu0 0.0
      %1164 = vmatpush2.msra.mxu0 0.0
      %1165 = vmatprep.subr.mxu0 0.0
      %1166 = vmatpush2.msra.mxu0 0.0
      %1167 = vmatprep.subr.mxu0 0.0
      %1168 = vmatpush2.msra.mxu0 0.0
      %1169 = vmatprep.mubr.f32.mxu0 0.0
      %1170 = vmatmul.mubr.f32.gmra.mxu0 %v1058
      %v1171 = vpop.f32.mrf.mxu0
      %v1172 = vadd.f32 0.0, %v1171
      %v1173 = vpop.f32.mrf.mxu0
      %1174 = vmatprep.mubr.f32.mxu0 0.0
      %1175 = vmatmul.mubr.f32.gmra.mxu0 %v1061
      %v1176 = vpop.f32.mrf.mxu0
      %v1177 = vadd.f32 0.0, %v1176
      %v1178 = vpop.f32.mrf.mxu0
      %1179 = vmatprep.mubr.f32.mxu0 0.0
      %1180 = vmatmul.mubr.f32.gmra.mxu0 %v1064
      %v1181 = vpop.f32.mrf.mxu0
      %v1182 = vadd.f32 0.0, %v1181
      %v1183 = vpop.f32.mrf.mxu0
      %1184 = vmatprep.mubr.f32.mxu0 0.0
      %1185 = vmatmul.mubr.f32.gmra.mxu0 %v1067
      %v1186 = vpop.f32.mrf.mxu0
      %v1187 = vadd.f32 0.0, %v1186
      %v1188 = vpop.f32.mrf.mxu0
      %1189 = vmatprep.mubr.f32.mxu0 0.0
      %1190 = vmatmul.mubr.f32.gmra.mxu0 %v1070
      %v1191 = vpop.f32.mrf.mxu0
      %v1192 = vadd.f32 0.0, %v1191
      %v1193 = vpop.f32.mrf.mxu0
      %1194 = vmatprep.mubr.f32.mxu0 0.0
      %1195 = vmatmul.mubr.f32.gmra.mxu0 %v1073
      %v1196 = vpop.f32.mrf.mxu0
      %v1197 = vadd.f32 0.0, %v1196
      %v1198 = vpop.f32.mrf.mxu0
      %1199 = vmatprep.mubr.f32.mxu0 0.0
      %1200 = vmatmul.mubr.f32.gmra.mxu0 %v1076
      %v1201 = vpop.f32.mrf.mxu0
      %v1202 = vadd.f32 0.0, %v1201
      %v1203 = vpop.f32.mrf.mxu0
      %1204 = vmatprep.mubr.f32.mxu0 0.0
      %1205 = vmatmul.mubr.f32.gmra.mxu0 %v1079
      %v1206 = vpop.f32.mrf.mxu0
      %v1207 = vadd.f32 0.0, %v1206
      %v1208 = vpop.f32.mrf.mxu0
      %1209 = vmatprep.mubr.f32.mxu0 0.0
      %1210 = vmatmul.mubr.f32.gmra.mxu0 %v1082
      %v1211 = vpop.f32.mrf.mxu0
      %v1212 = vadd.f32 0.0, %v1211
      %v1213 = vpop.f32.mrf.mxu0
      %1214 = vmatprep.mubr.f32.mxu0 0.0
      %1215 = vmatmul.mubr.f32.gmra.mxu0 %v1085
      %v1216 = vpop.f32.mrf.mxu0
      %v1217 = vadd.f32 0.0, %v1216
      %v1218 = vpop.f32.mrf.mxu0
      %1219 = vmatprep.mubr.f32.mxu0 0.0
      %1220 = vmatmul.mubr.f32.gmra.mxu0 %v1088
      %v1221 = vpop.f32.mrf.mxu0
      %v1222 = vadd.f32 0.0, %v1221
      %v1223 = vpop.f32.mrf.mxu0
      %1224 = vmatprep.mubr.f32.mxu0 0.0
      %1225 = vmatmul.mubr.f32.gmra.mxu0 %v1091
      %v1226 = vpop.f32.mrf.mxu0
      %v1227 = vadd.f32 0.0, %v1226
      %v1228 = vpop.f32.mrf.mxu0
      %1229 = vmatprep.mubr.f32.mxu0 0.0
      %1230 = vmatmul.mubr.f32.gmra.mxu0 %v1094
      %v1231 = vpop.f32.mrf.mxu0
      %v1232 = vadd.f32 0.0, %v1231
      %v1233 = vpop.f32.mrf.mxu0
      %1234 = vmatprep.mubr.f32.mxu0 0.0
      %1235 = vmatmul.mubr.f32.gmra.mxu0 %v1097
      %v1236 = vpop.f32.mrf.mxu0
      %v1237 = vadd.f32 0.0, %v1236
      %v1238 = vpop.f32.mrf.mxu0
      %1239 = vmatprep.mubr.f32.mxu0 0.0
      %1240 = vmatmul.mubr.f32.gmra.mxu0 %v1100
      %v1241 = vpop.f32.mrf.mxu0
      %v1242 = vadd.f32 0.0, %v1241
      %v1243 = vpop.f32.mrf.mxu0
      %1244 = vmatprep.mubr.f32.mxu0 0.0
      %1245 = vmatmul.mubr.f32.gmra.mxu0 %v1103
      %v1246 = vpop.f32.mrf.mxu0
      %v1247 = vadd.f32 0.0, %v1246
      %v1248 = vpop.f32.mrf.mxu0
      %1249 = vdwg.mxu0
      %v1250 = vlaneseq
      %v1251 = vand.u32 %v1250, 127
      %vm1252 = vcmp.ge.s32.totalorder %v1251, 16
      %vm1253 = vcmp.lt.s32.totalorder %v1251, 32
      %vm1254 = vmand %vm1252, %vm1253
      %v1255 = vsub.s32 %v1251, 16
      %vm1256 = vcmp.lt.s32.totalorder %v1255, 0
      %v1257 = vsub.s32 0, %v1255
      %v1258 = vsel %vm1256, %v1257, %v1255
      %v1259 = vmul.u32.u64.compose %v1258, 3435973837
      %v1260 = vextract.low.u32 %v1259
      %v1261 = vextract.high.u32 %v1259
      %v1262 = vshrl.u32 %v1261, 2
      %v1263 = vmul.u32 %v1262, 5
      %v1264 = vsub.s32 %v1258, %v1263
      %v1265 = vsub.s32 0, %v1264
      %v1266 = vsel %vm1256, %v1265, %v1264
      %vm1267 = vcmp.ne.s32.totalorder %v1266, 0
      %vm1268 = vcmp.lt.s32.totalorder %v1266, 0
      %vm1269 = vmand %vm1268, %vm1267
      %v1270 = vadd.s32 %v1266, 5
      %v1271 = vsel %vm1269, %v1270, %v1266
      %vm1272 = vcmp.eq.s32.totalorder %v1271, 0
      %vm1273 = vmand %vm1254, %vm1272
      %v1274 = vand.u32 2147483647, %v1172
      %v1275 = vand.u32 2147483647, %v1177
      %v1276 = vand.u32 2147483647, %v1182
      %v1277 = vand.u32 2147483647, %v1187
      %v1278 = vand.u32 2147483647, %v1192
      %v1279 = vand.u32 2147483647, %v1197
      %v1280 = vand.u32 2147483647, %v1202
      %v1281 = vand.u32 2147483647, %v1207
      %v1282 = vand.u32 2147483647, %v1212
      %v1283 = vand.u32 2147483647, %v1217
      %v1284 = vand.u32 2147483647, %v1222
      %v1285 = vand.u32 2147483647, %v1227
      %v1286 = vand.u32 2147483647, %v1232
      %v1287 = vand.u32 2147483647, %v1237
      %v1288 = vand.u32 2147483647, %v1242
      %v1289 = vand.u32 2147483647, %v1247
      %v1290 = vsel %vm1273, 1, 0
      %vm1291 = vcmp.eq.s32.totalorder %v1290, 1
      %v1292 = vsel %vm1291, %v1274, %v1172
      %v1293 = vsel %vm1291, %v1275, %v1177
      %v1294 = vsel %vm1291, %v1276, %v1182
      %v1295 = vsel %vm1291, %v1277, %v1187
      %v1296 = vsel %vm1291, %v1278, %v1192
      %v1297 = vsel %vm1291, %v1279, %v1197
      %v1298 = vsel %vm1291, %v1280, %v1202
      %v1299 = vsel %vm1291, %v1281, %v1207
      %v1300 = vsel %vm1291, %v1282, %v1212
      %v1301 = vsel %vm1291, %v1283, %v1217
      %v1302 = vsel %vm1291, %v1284, %v1222
      %v1303 = vsel %vm1291, %v1285, %v1227
      %v1304 = vsel %vm1291, %v1286, %v1232
      %v1305 = vsel %vm1291, %v1287, %v1237
      %v1306 = vsel %vm1291, %v1288, %v1242
      %v1307 = vsel %vm1291, %v1289, %v1247
      %v1308 = vld [vmem:[%s8] sm:$0xff]
      %v1309 = vld [vmem:[%s8 + $0x8] sm:$0xff]
      %v1310 = vld [vmem:[%s8 + $0x10] sm:$0xff]
      %v1311 = vld [vmem:[%s8 + $0x18] sm:$0xff]
      %v1312 = vld [vmem:[%s8 + $0x20] sm:$0xff]
      %v1313 = vld [vmem:[%s8 + $0x28] sm:$0xff]
      %v1314 = vld [vmem:[%s8 + $0x30] sm:$0xff]
      %v1315 = vld [vmem:[%s8 + $0x38] sm:$0xff]
      %vm1316 = vcmask 523264
      %v1318 = vsel %vm1316, %v1292, 0
      %v1321 = vsel %vm1316, %v1293, 0
      %v1324 = vsel %vm1316, %v1294, 0
      %v1327 = vsel %vm1316, %v1295, 0
      %v1330 = vsel %vm1316, %v1296, 0
      %v1333 = vsel %vm1316, %v1297, 0
      %v1336 = vsel %vm1316, %v1298, 0
      %v1339 = vsel %vm1316, %v1299, 0
      %v1342 = vsel %vm1316, %v1300, 0
      %v1345 = vsel %vm1316, %v1301, 0
      %v1348 = vsel %vm1316, %v1302, 0
      %v1351 = vsel %vm1316, %v1303, 0
      %v1354 = vsel %vm1316, %v1304, 0
      %v1357 = vsel %vm1316, %v1305, 0
      %v1360 = vsel %vm1316, %v1306, 0
      %v1363 = vsel %vm1316, %v1307, 0
      %1365 = vmatprep.subr.mxu0 0.0
      %1366 = vmatpush1.msra.mxu0 0.0
      %1367 = vmatprep.subr.mxu0 0.0
      %1368 = vmatpush1.msra.mxu0 0.0
      %1369 = vmatprep.subr.mxu0 0.0
      %1370 = vmatpush1.msra.mxu0 0.0
      %1371 = vmatprep.subr.mxu0 0.0
      %1372 = vmatpush1.msra.mxu0 0.0
      %1373 = vmatprep.subr.mxu0 0.0
      %1374 = vmatpush1.msra.mxu0 0.0
      %1375 = vmatprep.subr.mxu0 0.0
      %1376 = vmatpush1.msra.mxu0 0.0
      %1377 = vmatprep.subr.mxu0 0.0
      %1378 = vmatpush1.msra.mxu0 0.0
      %1379 = vmatprep.subr.mxu0 0.0
      %1380 = vmatpush1.msra.mxu0 0.0
      %1381 = vmatprep.subr.mxu0 0.0
      %1382 = vmatpush1.msra.mxu0 %v1315
      %1383 = vmatprep.subr.mxu0 0.0
      %1384 = vmatpush1.msra.mxu0 %v1314
      %1385 = vmatprep.subr.mxu0 0.0
      %1386 = vmatpush1.msra.mxu0 %v1313
      %1387 = vmatprep.subr.mxu0 0.0
      %1388 = vmatpush1.msra.mxu0 %v1312
      %1389 = vmatprep.subr.mxu0 0.0
      %1390 = vmatpush1.msra.mxu0 %v1311
      %1391 = vmatprep.subr.mxu0 0.0
      %1392 = vmatpush1.msra.mxu0 %v1310
      %1393 = vmatprep.subr.mxu0 0.0
      %1394 = vmatpush1.msra.mxu0 %v1309
      %1395 = vmatprep.subr.mxu0 0.0
      %1396 = vmatpush1.msra.mxu0 %v1308
      %1397 = vmatprep.subr.mxu0 0.0
      %1398 = vmatpush2.msra.mxu0 0.0
      %1399 = vmatprep.subr.mxu0 0.0
      %1400 = vmatpush2.msra.mxu0 0.0
      %1401 = vmatprep.subr.mxu0 0.0
      %1402 = vmatpush2.msra.mxu0 0.0
      %1403 = vmatprep.subr.mxu0 0.0
      %1404 = vmatpush2.msra.mxu0 0.0
      %1405 = vmatprep.subr.mxu0 0.0
      %1406 = vmatpush2.msra.mxu0 0.0
      %1407 = vmatprep.subr.mxu0 0.0
      %1408 = vmatpush2.msra.mxu0 0.0
      %1409 = vmatprep.subr.mxu0 0.0
      %1410 = vmatpush2.msra.mxu0 0.0
      %1411 = vmatprep.subr.mxu0 0.0
      %1412 = vmatpush2.msra.mxu0 0.0
      %1413 = vmatprep.subr.mxu0 0.0
      %1414 = vmatpush2.msra.mxu0 0.0
      %1415 = vmatprep.subr.mxu0 0.0
      %1416 = vmatpush2.msra.mxu0 0.0
      %1417 = vmatprep.subr.mxu0 0.0
      %1418 = vmatpush2.msra.mxu0 0.0
      %1419 = vmatprep.subr.mxu0 0.0
      %1420 = vmatpush2.msra.mxu0 0.0
      %1421 = vmatprep.subr.mxu0 0.0
      %1422 = vmatpush2.msra.mxu0 0.0
      %1423 = vmatprep.subr.mxu0 0.0
      %1424 = vmatpush2.msra.mxu0 0.0
      %1425 = vmatprep.subr.mxu0 0.0
      %1426 = vmatpush2.msra.mxu0 0.0
      %1427 = vmatprep.subr.mxu0 0.0
      %1428 = vmatpush2.msra.mxu0 0.0
      %1429 = vmatprep.mubr.f32.mxu0 0.0
      %1430 = vmatmul.mubr.f32.gmra.mxu0 %v1318
      %v1431 = vpop.f32.mrf.mxu0
      %v1432 = vadd.f32 0.0, %v1431
      %v1433 = vpop.f32.mrf.mxu0
      %1434 = vmatprep.mubr.f32.mxu0 0.0
      %1435 = vmatmul.mubr.f32.gmra.mxu0 %v1321
      %v1436 = vpop.f32.mrf.mxu0
      %v1437 = vadd.f32 0.0, %v1436
      %v1438 = vpop.f32.mrf.mxu0
      %1439 = vmatprep.mubr.f32.mxu0 0.0
      %1440 = vmatmul.mubr.f32.gmra.mxu0 %v1324
      %v1441 = vpop.f32.mrf.mxu0
      %v1442 = vadd.f32 0.0, %v1441
      %v1443 = vpop.f32.mrf.mxu0
      %1444 = vmatprep.mubr.f32.mxu0 0.0
      %1445 = vmatmul.mubr.f32.gmra.mxu0 %v1327
      %v1446 = vpop.f32.mrf.mxu0
      %v1447 = vadd.f32 0.0, %v1446
      %v1448 = vpop.f32.mrf.mxu0
      %1449 = vmatprep.mubr.f32.mxu0 0.0
      %1450 = vmatmul.mubr.f32.gmra.mxu0 %v1330
      %v1451 = vpop.f32.mrf.mxu0
      %v1452 = vadd.f32 0.0, %v1451
      %v1453 = vpop.f32.mrf.mxu0
      %1454 = vmatprep.mubr.f32.mxu0 0.0
      %1455 = vmatmul.mubr.f32.gmra.mxu0 %v1333
      %v1456 = vpop.f32.mrf.mxu0
      %v1457 = vadd.f32 0.0, %v1456
      %v1458 = vpop.f32.mrf.mxu0
      %1459 = vmatprep.mubr.f32.mxu0 0.0
      %1460 = vmatmul.mubr.f32.gmra.mxu0 %v1336
      %v1461 = vpop.f32.mrf.mxu0
      %v1462 = vadd.f32 0.0, %v1461
      %v1463 = vpop.f32.mrf.mxu0
      %1464 = vmatprep.mubr.f32.mxu0 0.0
      %1465 = vmatmul.mubr.f32.gmra.mxu0 %v1339
      %v1466 = vpop.f32.mrf.mxu0
      %v1467 = vadd.f32 0.0, %v1466
      %v1468 = vpop.f32.mrf.mxu0
      %1469 = vmatprep.mubr.f32.mxu0 0.0
      %1470 = vmatmul.mubr.f32.gmra.mxu0 %v1342
      %v1471 = vpop.f32.mrf.mxu0
      %v1472 = vadd.f32 0.0, %v1471
      %v1473 = vpop.f32.mrf.mxu0
      %1474 = vmatprep.mubr.f32.mxu0 0.0
      %1475 = vmatmul.mubr.f32.gmra.mxu0 %v1345
      %v1476 = vpop.f32.mrf.mxu0
      %v1477 = vadd.f32 0.0, %v1476
      %v1478 = vpop.f32.mrf.mxu0
      %1479 = vmatprep.mubr.f32.mxu0 0.0
      %1480 = vmatmul.mubr.f32.gmra.mxu0 %v1348
      %v1481 = vpop.f32.mrf.mxu0
      %v1482 = vadd.f32 0.0, %v1481
      %v1483 = vpop.f32.mrf.mxu0
      %1484 = vmatprep.mubr.f32.mxu0 0.0
      %1485 = vmatmul.mubr.f32.gmra.mxu0 %v1351
      %v1486 = vpop.f32.mrf.mxu0
      %v1487 = vadd.f32 0.0, %v1486
      %v1488 = vpop.f32.mrf.mxu0
      %1489 = vmatprep.mubr.f32.mxu0 0.0
      %1490 = vmatmul.mubr.f32.gmra.mxu0 %v1354
      %v1491 = vpop.f32.mrf.mxu0
      %v1492 = vadd.f32 0.0, %v1491
      %v1493 = vpop.f32.mrf.mxu0
      %1494 = vmatprep.mubr.f32.mxu0 0.0
      %1495 = vmatmul.mubr.f32.gmra.mxu0 %v1357
      %v1496 = vpop.f32.mrf.mxu0
      %v1497 = vadd.f32 0.0, %v1496
      %v1498 = vpop.f32.mrf.mxu0
      %1499 = vmatprep.mubr.f32.mxu0 0.0
      %1500 = vmatmul.mubr.f32.gmra.mxu0 %v1360
      %v1501 = vpop.f32.mrf.mxu0
      %v1502 = vadd.f32 0.0, %v1501
      %v1503 = vpop.f32.mrf.mxu0
      %1504 = vmatprep.mubr.f32.mxu0 0.0
      %1505 = vmatmul.mubr.f32.gmra.mxu0 %v1363
      %v1506 = vpop.f32.mrf.mxu0
      %v1507 = vadd.f32 0.0, %v1506
      %v1508 = vpop.f32.mrf.mxu0
      %1509 = vdwg.mxu0
      %1526 = vrot.lane.b32.xlu0 %v1432, 64
      %v1527 = vpop.permute.xlu0 %1526
      %1528 = vrot.lane.b32.xlu0 %v1437, 64
      %v1529 = vpop.permute.xlu0 %1528
      %1530 = vrot.lane.b32.xlu0 %v1442, 64
      %v1531 = vpop.permute.xlu0 %1530
      %1532 = vrot.lane.b32.xlu0 %v1447, 64
      %v1533 = vpop.permute.xlu0 %1532
      %1534 = vrot.lane.b32.xlu0 %v1452, 64
      %v1535 = vpop.permute.xlu0 %1534
      %1536 = vrot.lane.b32.xlu0 %v1457, 64
      %v1537 = vpop.permute.xlu0 %1536
      %1538 = vrot.lane.b32.xlu0 %v1462, 64
      %v1539 = vpop.permute.xlu0 %1538
      %1540 = vrot.lane.b32.xlu0 %v1467, 64
      %v1541 = vpop.permute.xlu0 %1540
      %1542 = vrot.lane.b32.xlu0 %v1472, 64
      %v1543 = vpop.permute.xlu0 %1542
      %1544 = vrot.lane.b32.xlu0 %v1477, 64
      %v1545 = vpop.permute.xlu0 %1544
      %1546 = vrot.lane.b32.xlu0 %v1482, 64
      %v1547 = vpop.permute.xlu0 %1546
      %1548 = vrot.lane.b32.xlu0 %v1487, 64
      %v1549 = vpop.permute.xlu0 %1548
      %1550 = vrot.lane.b32.xlu0 %v1492, 64
      %v1551 = vpop.permute.xlu0 %1550
      %1552 = vrot.lane.b32.xlu0 %v1497, 64
      %v1553 = vpop.permute.xlu0 %1552
      %1554 = vrot.lane.b32.xlu0 %v1502, 64
      %v1555 = vpop.permute.xlu0 %1554
      %1556 = vrot.lane.b32.xlu0 %v1507, 64
      %v1557 = vpop.permute.xlu0 %1556
      %v1574 = vmul.f32 %v1432, %v1527
      %v1575 = vmul.f32 %v1437, %v1529
      %v1576 = vmul.f32 %v1442, %v1531
      %v1577 = vmul.f32 %v1447, %v1533
      %v1578 = vmul.f32 %v1452, %v1535
      %v1579 = vmul.f32 %v1457, %v1537
      %v1580 = vmul.f32 %v1462, %v1539
      %v1581 = vmul.f32 %v1467, %v1541
      %v1582 = vmul.f32 %v1472, %v1543
      %v1583 = vmul.f32 %v1477, %v1545
      %v1584 = vmul.f32 %v1482, %v1547
      %v1585 = vmul.f32 %v1487, %v1549
      %v1586 = vmul.f32 %v1492, %v1551
      %v1587 = vmul.f32 %v1497, %v1553
      %v1588 = vmul.f32 %v1502, %v1555
      %v1589 = vmul.f32 %v1507, %v1557
      %v1590 = vld [vmem:[%s9] sm:$0xff]
      %v1591 = vld [vmem:[%s9 + $0x8] sm:$0xff]
      %v1592 = vld [vmem:[%s9 + $0x10] sm:$0xff]
      %v1593 = vld [vmem:[%s9 + $0x18] sm:$0xff]
      %v1594 = vld [vmem:[%s9 + $0x20] sm:$0xff]
      %v1595 = vld [vmem:[%s9 + $0x28] sm:$0xff]
      %v1596 = vld [vmem:[%s9 + $0x30] sm:$0xff]
      %v1597 = vld [vmem:[%s9 + $0x38] sm:$0xff]
      %v1599 = vsel %vm1316, %v1574, 0
      %v1602 = vsel %vm1316, %v1575, 0
      %v1605 = vsel %vm1316, %v1576, 0
      %v1608 = vsel %vm1316, %v1577, 0
      %v1611 = vsel %vm1316, %v1578, 0
      %v1614 = vsel %vm1316, %v1579, 0
      %v1617 = vsel %vm1316, %v1580, 0
      %v1620 = vsel %vm1316, %v1581, 0
      %v1623 = vsel %vm1316, %v1582, 0
      %v1626 = vsel %vm1316, %v1583, 0
      %v1629 = vsel %vm1316, %v1584, 0
      %v1632 = vsel %vm1316, %v1585, 0
      %v1635 = vsel %vm1316, %v1586, 0
      %v1638 = vsel %vm1316, %v1587, 0
      %v1641 = vsel %vm1316, %v1588, 0
      %v1644 = vsel %vm1316, %v1589, 0
      %1646 = vmatprep.subr.mxu0 0.0
      %1647 = vmatpush1.msra.mxu0 0.0
      %1648 = vmatprep.subr.mxu0 0.0
      %1649 = vmatpush1.msra.mxu0 0.0
      %1650 = vmatprep.subr.mxu0 0.0
      %1651 = vmatpush1.msra.mxu0 0.0
      %1652 = vmatprep.subr.mxu0 0.0
      %1653 = vmatpush1.msra.mxu0 0.0
      %1654 = vmatprep.subr.mxu0 0.0
      %1655 = vmatpush1.msra.mxu0 0.0
      %1656 = vmatprep.subr.mxu0 0.0
      %1657 = vmatpush1.msra.mxu0 0.0
      %1658 = vmatprep.subr.mxu0 0.0
      %1659 = vmatpush1.msra.mxu0 0.0
      %1660 = vmatprep.subr.mxu0 0.0
      %1661 = vmatpush1.msra.mxu0 0.0
      %1662 = vmatprep.subr.mxu0 0.0
      %1663 = vmatpush1.msra.mxu0 %v1597
      %1664 = vmatprep.subr.mxu0 0.0
      %1665 = vmatpush1.msra.mxu0 %v1596
      %1666 = vmatprep.subr.mxu0 0.0
      %1667 = vmatpush1.msra.mxu0 %v1595
      %1668 = vmatprep.subr.mxu0 0.0
      %1669 = vmatpush1.msra.mxu0 %v1594
      %1670 = vmatprep.subr.mxu0 0.0
      %1671 = vmatpush1.msra.mxu0 %v1593
      %1672 = vmatprep.subr.mxu0 0.0
      %1673 = vmatpush1.msra.mxu0 %v1592
      %1674 = vmatprep.subr.mxu0 0.0
      %1675 = vmatpush1.msra.mxu0 %v1591
      %1676 = vmatprep.subr.mxu0 0.0
      %1677 = vmatpush1.msra.mxu0 %v1590
      %1678 = vmatprep.subr.mxu0 0.0
      %1679 = vmatpush2.msra.mxu0 0.0
      %1680 = vmatprep.subr.mxu0 0.0
      %1681 = vmatpush2.msra.mxu0 0.0
      %1682 = vmatprep.subr.mxu0 0.0
      %1683 = vmatpush2.msra.mxu0 0.0
      %1684 = vmatprep.subr.mxu0 0.0
      %1685 = vmatpush2.msra.mxu0 0.0
      %1686 = vmatprep.subr.mxu0 0.0
      %1687 = vmatpush2.msra.mxu0 0.0
      %1688 = vmatprep.subr.mxu0 0.0
      %1689 = vmatpush2.msra.mxu0 0.0
      %1690 = vmatprep.subr.mxu0 0.0
      %1691 = vmatpush2.msra.mxu0 0.0
      %1692 = vmatprep.subr.mxu0 0.0
      %1693 = vmatpush2.msra.mxu0 0.0
      %1694 = vmatprep.subr.mxu0 0.0
      %1695 = vmatpush2.msra.mxu0 0.0
      %1696 = vmatprep.subr.mxu0 0.0
      %1697 = vmatpush2.msra.mxu0 0.0
      %1698 = vmatprep.subr.mxu0 0.0
      %1699 = vmatpush2.msra.mxu0 0.0
      %1700 = vmatprep.subr.mxu0 0.0
      %1701 = vmatpush2.msra.mxu0 0.0
      %1702 = vmatprep.subr.mxu0 0.0
      %1703 = vmatpush2.msra.mxu0 0.0
      %1704 = vmatprep.subr.mxu0 0.0
      %1705 = vmatpush2.msra.mxu0 0.0
      %1706 = vmatprep.subr.mxu0 0.0
      %1707 = vmatpush2.msra.mxu0 0.0
      %1708 = vmatprep.subr.mxu0 0.0
      %1709 = vmatpush2.msra.mxu0 0.0
      %1710 = vmatprep.mubr.f32.mxu0 0.0
      %1711 = vmatmul.mubr.f32.gmra.mxu0 %v1599
      %v1712 = vpop.f32.mrf.mxu0
      %v1713 = vadd.f32 0.0, %v1712
      %v1714 = vpop.f32.mrf.mxu0
      %1715 = vmatprep.mubr.f32.mxu0 0.0
      %1716 = vmatmul.mubr.f32.gmra.mxu0 %v1602
      %v1717 = vpop.f32.mrf.mxu0
      %v1718 = vadd.f32 0.0, %v1717
      %v1719 = vpop.f32.mrf.mxu0
      %1720 = vmatprep.mubr.f32.mxu0 0.0
      %1721 = vmatmul.mubr.f32.gmra.mxu0 %v1605
      %v1722 = vpop.f32.mrf.mxu0
      %v1723 = vadd.f32 0.0, %v1722
      %v1724 = vpop.f32.mrf.mxu0
      %1725 = vmatprep.mubr.f32.mxu0 0.0
      %1726 = vmatmul.mubr.f32.gmra.mxu0 %v1608
      %v1727 = vpop.f32.mrf.mxu0
      %v1728 = vadd.f32 0.0, %v1727
      %v1729 = vpop.f32.mrf.mxu0
      %1730 = vmatprep.mubr.f32.mxu0 0.0
      %1731 = vmatmul.mubr.f32.gmra.mxu0 %v1611
      %v1732 = vpop.f32.mrf.mxu0
      %v1733 = vadd.f32 0.0, %v1732
      %v1734 = vpop.f32.mrf.mxu0
      %1735 = vmatprep.mubr.f32.mxu0 0.0
      %1736 = vmatmul.mubr.f32.gmra.mxu0 %v1614
      %v1737 = vpop.f32.mrf.mxu0
      %v1738 = vadd.f32 0.0, %v1737
      %v1739 = vpop.f32.mrf.mxu0
      %1740 = vmatprep.mubr.f32.mxu0 0.0
      %1741 = vmatmul.mubr.f32.gmra.mxu0 %v1617
      %v1742 = vpop.f32.mrf.mxu0
      %v1743 = vadd.f32 0.0, %v1742
      %v1744 = vpop.f32.mrf.mxu0
      %1745 = vmatprep.mubr.f32.mxu0 0.0
      %1746 = vmatmul.mubr.f32.gmra.mxu0 %v1620
      %v1747 = vpop.f32.mrf.mxu0
      %v1748 = vadd.f32 0.0, %v1747
      %v1749 = vpop.f32.mrf.mxu0
      %1750 = vmatprep.mubr.f32.mxu0 0.0
      %1751 = vmatmul.mubr.f32.gmra.mxu0 %v1623
      %v1752 = vpop.f32.mrf.mxu0
      %v1753 = vadd.f32 0.0, %v1752
      %v1754 = vpop.f32.mrf.mxu0
      %1755 = vmatprep.mubr.f32.mxu0 0.0
      %1756 = vmatmul.mubr.f32.gmra.mxu0 %v1626
      %v1757 = vpop.f32.mrf.mxu0
      %v1758 = vadd.f32 0.0, %v1757
      %v1759 = vpop.f32.mrf.mxu0
      %1760 = vmatprep.mubr.f32.mxu0 0.0
      %1761 = vmatmul.mubr.f32.gmra.mxu0 %v1629
      %v1762 = vpop.f32.mrf.mxu0
      %v1763 = vadd.f32 0.0, %v1762
      %v1764 = vpop.f32.mrf.mxu0
      %1765 = vmatprep.mubr.f32.mxu0 0.0
      %1766 = vmatmul.mubr.f32.gmra.mxu0 %v1632
      %v1767 = vpop.f32.mrf.mxu0
      %v1768 = vadd.f32 0.0, %v1767
      %v1769 = vpop.f32.mrf.mxu0
      %1770 = vmatprep.mubr.f32.mxu0 0.0
      %1771 = vmatmul.mubr.f32.gmra.mxu0 %v1635
      %v1772 = vpop.f32.mrf.mxu0
      %v1773 = vadd.f32 0.0, %v1772
      %v1774 = vpop.f32.mrf.mxu0
      %1775 = vmatprep.mubr.f32.mxu0 0.0
      %1776 = vmatmul.mubr.f32.gmra.mxu0 %v1638
      %v1777 = vpop.f32.mrf.mxu0
      %v1778 = vadd.f32 0.0, %v1777
      %v1779 = vpop.f32.mrf.mxu0
      %1780 = vmatprep.mubr.f32.mxu0 0.0
      %1781 = vmatmul.mubr.f32.gmra.mxu0 %v1641
      %v1782 = vpop.f32.mrf.mxu0
      %v1783 = vadd.f32 0.0, %v1782
      %v1784 = vpop.f32.mrf.mxu0
      %1785 = vmatprep.mubr.f32.mxu0 0.0
      %1786 = vmatmul.mubr.f32.gmra.mxu0 %v1644
      %v1787 = vpop.f32.mrf.mxu0
      %v1788 = vadd.f32 0.0, %v1787
      %v1789 = vpop.f32.mrf.mxu0
      %1790 = vdwg.mxu0
      %1791 = vrot.lane.b32.xlu0 %v1292, 96
      %v1792 = vpop.permute.xlu0 %1791
      %1793 = vrot.lane.b32.xlu0 %v1293, 96
      %v1794 = vpop.permute.xlu0 %1793
      %1795 = vrot.lane.b32.xlu0 %v1294, 96
      %v1796 = vpop.permute.xlu0 %1795
      %1797 = vrot.lane.b32.xlu0 %v1295, 96
      %v1798 = vpop.permute.xlu0 %1797
      %1799 = vrot.lane.b32.xlu0 %v1296, 96
      %v1800 = vpop.permute.xlu0 %1799
      %1801 = vrot.lane.b32.xlu0 %v1297, 96
      %v1802 = vpop.permute.xlu0 %1801
      %1803 = vrot.lane.b32.xlu0 %v1298, 96
      %v1804 = vpop.permute.xlu0 %1803
      %1805 = vrot.lane.b32.xlu0 %v1299, 96
      %v1806 = vpop.permute.xlu0 %1805
      %1807 = vrot.lane.b32.xlu0 %v1300, 96
      %v1808 = vpop.permute.xlu0 %1807
      %1809 = vrot.lane.b32.xlu0 %v1301, 96
      %v1810 = vpop.permute.xlu0 %1809
      %1811 = vrot.lane.b32.xlu0 %v1302, 96
      %v1812 = vpop.permute.xlu0 %1811
      %1813 = vrot.lane.b32.xlu0 %v1303, 96
      %v1814 = vpop.permute.xlu0 %1813
      %1815 = vrot.lane.b32.xlu0 %v1304, 96
      %v1816 = vpop.permute.xlu0 %1815
      %1817 = vrot.lane.b32.xlu0 %v1305, 96
      %v1818 = vpop.permute.xlu0 %1817
      %1819 = vrot.lane.b32.xlu0 %v1306, 96
      %v1820 = vpop.permute.xlu0 %1819
      %1821 = vrot.lane.b32.xlu0 %v1307, 96
      %v1822 = vpop.permute.xlu0 %1821
      %v1839 = vmul.f32 %v1292, %v1792
      %v1840 = vmul.f32 %v1293, %v1794
      %v1841 = vmul.f32 %v1294, %v1796
      %v1842 = vmul.f32 %v1295, %v1798
      %v1843 = vmul.f32 %v1296, %v1800
      %v1844 = vmul.f32 %v1297, %v1802
      %v1845 = vmul.f32 %v1298, %v1804
      %v1846 = vmul.f32 %v1299, %v1806
      %v1847 = vmul.f32 %v1300, %v1808
      %v1848 = vmul.f32 %v1301, %v1810
      %v1849 = vmul.f32 %v1302, %v1812
      %v1850 = vmul.f32 %v1303, %v1814
      %v1851 = vmul.f32 %v1304, %v1816
      %v1852 = vmul.f32 %v1305, %v1818
      %v1853 = vmul.f32 %v1306, %v1820
      %v1854 = vmul.f32 %v1307, %v1822
      %1855 = vrot.lane.b32.xlu0 %v1292, 80
      %v1856 = vpop.permute.xlu0 %1855
      %1857 = vrot.lane.b32.xlu0 %v1293, 80
      %v1858 = vpop.permute.xlu0 %1857
      %1859 = vrot.lane.b32.xlu0 %v1294, 80
      %v1860 = vpop.permute.xlu0 %1859
      %1861 = vrot.lane.b32.xlu0 %v1295, 80
      %v1862 = vpop.permute.xlu0 %1861
      %1863 = vrot.lane.b32.xlu0 %v1296, 80
      %v1864 = vpop.permute.xlu0 %1863
      %1865 = vrot.lane.b32.xlu0 %v1297, 80
      %v1866 = vpop.permute.xlu0 %1865
      %1867 = vrot.lane.b32.xlu0 %v1298, 80
      %v1868 = vpop.permute.xlu0 %1867
      %1869 = vrot.lane.b32.xlu0 %v1299, 80
      %v1870 = vpop.permute.xlu0 %1869
      %1871 = vrot.lane.b32.xlu0 %v1300, 80
      %v1872 = vpop.permute.xlu0 %1871
      %1873 = vrot.lane.b32.xlu0 %v1301, 80
      %v1874 = vpop.permute.xlu0 %1873
      %1875 = vrot.lane.b32.xlu0 %v1302, 80
      %v1876 = vpop.permute.xlu0 %1875
      %1877 = vrot.lane.b32.xlu0 %v1303, 80
      %v1878 = vpop.permute.xlu0 %1877
      %1879 = vrot.lane.b32.xlu0 %v1304, 80
      %v1880 = vpop.permute.xlu0 %1879
      %1881 = vrot.lane.b32.xlu0 %v1305, 80
      %v1882 = vpop.permute.xlu0 %1881
      %1883 = vrot.lane.b32.xlu0 %v1306, 80
      %v1884 = vpop.permute.xlu0 %1883
      %1885 = vrot.lane.b32.xlu0 %v1307, 80
      %v1886 = vpop.permute.xlu0 %1885
      %v1903 = vmul.f32 %v1292, %v1856
      %v1904 = vmul.f32 %v1293, %v1858
      %v1905 = vmul.f32 %v1294, %v1860
      %v1906 = vmul.f32 %v1295, %v1862
      %v1907 = vmul.f32 %v1296, %v1864
      %v1908 = vmul.f32 %v1297, %v1866
      %v1909 = vmul.f32 %v1298, %v1868
      %v1910 = vmul.f32 %v1299, %v1870
      %v1911 = vmul.f32 %v1300, %v1872
      %v1912 = vmul.f32 %v1301, %v1874
      %v1913 = vmul.f32 %v1302, %v1876
      %v1914 = vmul.f32 %v1303, %v1878
      %v1915 = vmul.f32 %v1304, %v1880
      %v1916 = vmul.f32 %v1305, %v1882
      %v1917 = vmul.f32 %v1306, %v1884
      %v1918 = vmul.f32 %v1307, %v1886
      %v1919 = vmul.f32 %v1713, %v1792
      %v1920 = vmul.f32 %v1718, %v1794
      %v1921 = vmul.f32 %v1723, %v1796
      %v1922 = vmul.f32 %v1728, %v1798
      %v1923 = vmul.f32 %v1733, %v1800
      %v1924 = vmul.f32 %v1738, %v1802
      %v1925 = vmul.f32 %v1743, %v1804
      %v1926 = vmul.f32 %v1748, %v1806
      %v1927 = vmul.f32 %v1753, %v1808
      %v1928 = vmul.f32 %v1758, %v1810
      %v1929 = vmul.f32 %v1763, %v1812
      %v1930 = vmul.f32 %v1768, %v1814
      %v1931 = vmul.f32 %v1773, %v1816
      %v1932 = vmul.f32 %v1778, %v1818
      %v1933 = vmul.f32 %v1783, %v1820
      %v1934 = vmul.f32 %v1788, %v1822
      %v1935 = vmul.f32 %v1713, %v1856
      %v1936 = vmul.f32 %v1718, %v1858
      %v1937 = vmul.f32 %v1723, %v1860
      %v1938 = vmul.f32 %v1728, %v1862
      %v1939 = vmul.f32 %v1733, %v1864
      %v1940 = vmul.f32 %v1738, %v1866
      %v1941 = vmul.f32 %v1743, %v1868
      %v1942 = vmul.f32 %v1748, %v1870
      %v1943 = vmul.f32 %v1753, %v1872
      %v1944 = vmul.f32 %v1758, %v1874
      %v1945 = vmul.f32 %v1763, %v1876
      %v1946 = vmul.f32 %v1768, %v1878
      %v1947 = vmul.f32 %v1773, %v1880
      %v1948 = vmul.f32 %v1778, %v1882
      %v1949 = vmul.f32 %v1783, %v1884
      %v1950 = vmul.f32 %v1788, %v1886
      %1967 = vrot.lane.b32.xlu0 %v1903, 16
      %v1968 = vpop.permute.xlu0 %1967
      %1969 = vrot.lane.b32.xlu0 %v1904, 16
      %v1970 = vpop.permute.xlu0 %1969
      %1971 = vrot.lane.b32.xlu0 %v1905, 16
      %v1972 = vpop.permute.xlu0 %1971
      %1973 = vrot.lane.b32.xlu0 %v1906, 16
      %v1974 = vpop.permute.xlu0 %1973
      %1975 = vrot.lane.b32.xlu0 %v1907, 16
      %v1976 = vpop.permute.xlu0 %1975
      %1977 = vrot.lane.b32.xlu0 %v1908, 16
      %v1978 = vpop.permute.xlu0 %1977
      %1979 = vrot.lane.b32.xlu0 %v1909, 16
      %v1980 = vpop.permute.xlu0 %1979
      %1981 = vrot.lane.b32.xlu0 %v1910, 16
      %v1982 = vpop.permute.xlu0 %1981
      %1983 = vrot.lane.b32.xlu0 %v1911, 16
      %v1984 = vpop.permute.xlu0 %1983
      %1985 = vrot.lane.b32.xlu0 %v1912, 16
      %v1986 = vpop.permute.xlu0 %1985
      %1987 = vrot.lane.b32.xlu0 %v1913, 16
      %v1988 = vpop.permute.xlu0 %1987
      %1989 = vrot.lane.b32.xlu0 %v1914, 16
      %v1990 = vpop.permute.xlu0 %1989
      %1991 = vrot.lane.b32.xlu0 %v1915, 16
      %v1992 = vpop.permute.xlu0 %1991
      %1993 = vrot.lane.b32.xlu0 %v1916, 16
      %v1994 = vpop.permute.xlu0 %1993
      %1995 = vrot.lane.b32.xlu0 %v1917, 16
      %v1996 = vpop.permute.xlu0 %1995
      %1997 = vrot.lane.b32.xlu0 %v1918, 16
      %v1998 = vpop.permute.xlu0 %1997
      %2031 = vrot.lane.b32.xlu0 %v1919, 32
      %v2032 = vpop.permute.xlu0 %2031
      %2033 = vrot.lane.b32.xlu0 %v1920, 32
      %v2034 = vpop.permute.xlu0 %2033
      %2035 = vrot.lane.b32.xlu0 %v1921, 32
      %v2036 = vpop.permute.xlu0 %2035
      %2037 = vrot.lane.b32.xlu0 %v1922, 32
      %v2038 = vpop.permute.xlu0 %2037
      %2039 = vrot.lane.b32.xlu0 %v1923, 32
      %v2040 = vpop.permute.xlu0 %2039
      %2041 = vrot.lane.b32.xlu0 %v1924, 32
      %v2042 = vpop.permute.xlu0 %2041
      %2043 = vrot.lane.b32.xlu0 %v1925, 32
      %v2044 = vpop.permute.xlu0 %2043
      %2045 = vrot.lane.b32.xlu0 %v1926, 32
      %v2046 = vpop.permute.xlu0 %2045
      %2047 = vrot.lane.b32.xlu0 %v1927, 32
      %v2048 = vpop.permute.xlu0 %2047
      %2049 = vrot.lane.b32.xlu0 %v1928, 32
      %v2050 = vpop.permute.xlu0 %2049
      %2051 = vrot.lane.b32.xlu0 %v1929, 32
      %v2052 = vpop.permute.xlu0 %2051
      %2053 = vrot.lane.b32.xlu0 %v1930, 32
      %v2054 = vpop.permute.xlu0 %2053
      %2055 = vrot.lane.b32.xlu0 %v1931, 32
      %v2056 = vpop.permute.xlu0 %2055
      %2057 = vrot.lane.b32.xlu0 %v1932, 32
      %v2058 = vpop.permute.xlu0 %2057
      %2059 = vrot.lane.b32.xlu0 %v1933, 32
      %v2060 = vpop.permute.xlu0 %2059
      %2061 = vrot.lane.b32.xlu0 %v1934, 32
      %v2062 = vpop.permute.xlu0 %2061
      %2095 = vrot.lane.b32.xlu0 %v1935, 48
      %v2096 = vpop.permute.xlu0 %2095
      %2097 = vrot.lane.b32.xlu0 %v1936, 48
      %v2098 = vpop.permute.xlu0 %2097
      %2099 = vrot.lane.b32.xlu0 %v1937, 48
      %v2100 = vpop.permute.xlu0 %2099
      %2101 = vrot.lane.b32.xlu0 %v1938, 48
      %v2102 = vpop.permute.xlu0 %2101
      %2103 = vrot.lane.b32.xlu0 %v1939, 48
      %v2104 = vpop.permute.xlu0 %2103
      %2105 = vrot.lane.b32.xlu0 %v1940, 48
      %v2106 = vpop.permute.xlu0 %2105
      %2107 = vrot.lane.b32.xlu0 %v1941, 48
      %v2108 = vpop.permute.xlu0 %2107
      %2109 = vrot.lane.b32.xlu0 %v1942, 48
      %v2110 = vpop.permute.xlu0 %2109
      %2111 = vrot.lane.b32.xlu0 %v1943, 48
      %v2112 = vpop.permute.xlu0 %2111
      %2113 = vrot.lane.b32.xlu0 %v1944, 48
      %v2114 = vpop.permute.xlu0 %2113
      %2115 = vrot.lane.b32.xlu0 %v1945, 48
      %v2116 = vpop.permute.xlu0 %2115
      %2117 = vrot.lane.b32.xlu0 %v1946, 48
      %v2118 = vpop.permute.xlu0 %2117
      %2119 = vrot.lane.b32.xlu0 %v1947, 48
      %v2120 = vpop.permute.xlu0 %2119
      %2121 = vrot.lane.b32.xlu0 %v1948, 48
      %v2122 = vpop.permute.xlu0 %2121
      %2123 = vrot.lane.b32.xlu0 %v1949, 48
      %v2124 = vpop.permute.xlu0 %2123
      %2125 = vrot.lane.b32.xlu0 %v1950, 48
      %v2126 = vpop.permute.xlu0 %2125
      %vm2143 = vcmask 130048
      %v2144 = vsel %vm2143, %v1839, %v1968
      %v2145 = vsel %vm2143, %v1840, %v1970
      %v2146 = vsel %vm2143, %v1841, %v1972
      %v2147 = vsel %vm2143, %v1842, %v1974
      %v2148 = vsel %vm2143, %v1843, %v1976
      %v2149 = vsel %vm2143, %v1844, %v1978
      %v2150 = vsel %vm2143, %v1845, %v1980
      %v2151 = vsel %vm2143, %v1846, %v1982
      %v2152 = vsel %vm2143, %v1847, %v1984
      %v2153 = vsel %vm2143, %v1848, %v1986
      %v2154 = vsel %vm2143, %v1849, %v1988
      %v2155 = vsel %vm2143, %v1850, %v1990
      %v2156 = vsel %vm2143, %v1851, %v1992
      %v2157 = vsel %vm2143, %v1852, %v1994
      %v2158 = vsel %vm2143, %v1853, %v1996
      %v2159 = vsel %vm2143, %v1854, %v1998
      %v2160 = vsel %vm639, %v2144, %v2032
      %v2161 = vsel %vm639, %v2145, %v2034
      %v2162 = vsel %vm639, %v2146, %v2036
      %v2163 = vsel %vm639, %v2147, %v2038
      %v2164 = vsel %vm639, %v2148, %v2040
      %v2165 = vsel %vm639, %v2149, %v2042
      %v2166 = vsel %vm639, %v2150, %v2044
      %v2167 = vsel %vm639, %v2151, %v2046
      %v2168 = vsel %vm639, %v2152, %v2048
      %v2169 = vsel %vm639, %v2153, %v2050
      %v2170 = vsel %vm639, %v2154, %v2052
      %v2171 = vsel %vm639, %v2155, %v2054
      %v2172 = vsel %vm639, %v2156, %v2056
      %v2173 = vsel %vm639, %v2157, %v2058
      %v2174 = vsel %vm639, %v2158, %v2060
      %v2175 = vsel %vm639, %v2159, %v2062
      %vm2176 = vcmask 392192
      %v2177 = vsel %vm2176, %v2160, %v2096
      %v2178 = vsel %vm2176, %v2161, %v2098
      %v2179 = vsel %vm2176, %v2162, %v2100
      %v2180 = vsel %vm2176, %v2163, %v2102
      %v2181 = vsel %vm2176, %v2164, %v2104
      %v2182 = vsel %vm2176, %v2165, %v2106
      %v2183 = vsel %vm2176, %v2166, %v2108
      %v2184 = vsel %vm2176, %v2167, %v2110
      %v2185 = vsel %vm2176, %v2168, %v2112
      %v2186 = vsel %vm2176, %v2169, %v2114
      %v2187 = vsel %vm2176, %v2170, %v2116
      %v2188 = vsel %vm2176, %v2171, %v2118
      %v2189 = vsel %vm2176, %v2172, %v2120
      %v2190 = vsel %vm2176, %v2173, %v2122
      %v2191 = vsel %vm2176, %v2174, %v2124
      %v2192 = vsel %vm2176, %v2175, %v2126
      %v2193 = vld [vmem:[%s10] sm:$0xff]
      %v2194 = vld [vmem:[%s10 + $0x8] sm:$0xff]
      %v2195 = vld [vmem:[%s10 + $0x10] sm:$0xff]
      %v2196 = vld [vmem:[%s10 + $0x18] sm:$0xff]
      %v2197 = vld [vmem:[%s10 + $0x20] sm:$0xff]
      %v2198 = vld [vmem:[%s10 + $0x28] sm:$0xff]
      %v2199 = vld [vmem:[%s10 + $0x30] sm:$0xff]
      %v2200 = vld [vmem:[%s10 + $0x38] sm:$0xff]
      %v2201 = vsel %vm414, %v390, 0.0
      %v2202 = vsel %vm414, %v391, 0.0
      %v2203 = vsel %vm414, %v392, 0.0
      %v2204 = vsel %vm414, %v393, 0.0
      %v2205 = vsel %vm414, %v394, 0.0
      %v2206 = vsel %vm414, %v395, 0.0
      %v2207 = vsel %vm414, %v396, 0.0
      %v2208 = vsel %vm414, %v397, 0.0
      %v2209 = vsel %vm414, %v398, 0.0
      %v2210 = vsel %vm414, %v399, 0.0
      %v2211 = vsel %vm414, %v400, 0.0
      %v2212 = vsel %vm414, %v401, 0.0
      %v2213 = vsel %vm414, %v402, 0.0
      %v2214 = vsel %vm414, %v403, 0.0
      %v2215 = vsel %vm414, %v404, 0.0
      %v2216 = vsel %vm414, %v405, 0.0
      %v2218 = vsel %vm1316, %v2177, 0
      %v2221 = vsel %vm1316, %v2178, 0
      %v2224 = vsel %vm1316, %v2179, 0
      %v2227 = vsel %vm1316, %v2180, 0
      %v2230 = vsel %vm1316, %v2181, 0
      %v2233 = vsel %vm1316, %v2182, 0
      %v2236 = vsel %vm1316, %v2183, 0
      %v2239 = vsel %vm1316, %v2184, 0
      %v2242 = vsel %vm1316, %v2185, 0
      %v2245 = vsel %vm1316, %v2186, 0
      %v2248 = vsel %vm1316, %v2187, 0
      %v2251 = vsel %vm1316, %v2188, 0
      %v2254 = vsel %vm1316, %v2189, 0
      %v2257 = vsel %vm1316, %v2190, 0
      %v2260 = vsel %vm1316, %v2191, 0
      %v2263 = vsel %vm1316, %v2192, 0
      %2265 = vmatprep.subr.mxu0 0.0
      %2266 = vmatpush1.msra.mxu0 0.0
      %2267 = vmatprep.subr.mxu0 0.0
      %2268 = vmatpush1.msra.mxu0 0.0
      %2269 = vmatprep.subr.mxu0 0.0
      %2270 = vmatpush1.msra.mxu0 0.0
      %2271 = vmatprep.subr.mxu0 0.0
      %2272 = vmatpush1.msra.mxu0 0.0
      %2273 = vmatprep.subr.mxu0 0.0
      %2274 = vmatpush1.msra.mxu0 0.0
      %2275 = vmatprep.subr.mxu0 0.0
      %2276 = vmatpush1.msra.mxu0 0.0
      %2277 = vmatprep.subr.mxu0 0.0
      %2278 = vmatpush1.msra.mxu0 0.0
      %2279 = vmatprep.subr.mxu0 0.0
      %2280 = vmatpush1.msra.mxu0 0.0
      %2281 = vmatprep.subr.mxu0 0.0
      %2282 = vmatpush1.msra.mxu0 %v2200
      %2283 = vmatprep.subr.mxu0 0.0
      %2284 = vmatpush1.msra.mxu0 %v2199
      %2285 = vmatprep.subr.mxu0 0.0
      %2286 = vmatpush1.msra.mxu0 %v2198
      %2287 = vmatprep.subr.mxu0 0.0
      %2288 = vmatpush1.msra.mxu0 %v2197
      %2289 = vmatprep.subr.mxu0 0.0
      %2290 = vmatpush1.msra.mxu0 %v2196
      %2291 = vmatprep.subr.mxu0 0.0
      %2292 = vmatpush1.msra.mxu0 %v2195
      %2293 = vmatprep.subr.mxu0 0.0
      %2294 = vmatpush1.msra.mxu0 %v2194
      %2295 = vmatprep.subr.mxu0 0.0
      %2296 = vmatpush1.msra.mxu0 %v2193
      %2297 = vmatprep.subr.mxu0 0.0
      %2298 = vmatpush2.msra.mxu0 0.0
      %2299 = vmatprep.subr.mxu0 0.0
      %2300 = vmatpush2.msra.mxu0 0.0
      %2301 = vmatprep.subr.mxu0 0.0
      %2302 = vmatpush2.msra.mxu0 0.0
      %2303 = vmatprep.subr.mxu0 0.0
      %2304 = vmatpush2.msra.mxu0 0.0
      %2305 = vmatprep.subr.mxu0 0.0
      %2306 = vmatpush2.msra.mxu0 0.0
      %2307 = vmatprep.subr.mxu0 0.0
      %2308 = vmatpush2.msra.mxu0 0.0
      %2309 = vmatprep.subr.mxu0 0.0
      %2310 = vmatpush2.msra.mxu0 0.0
      %2311 = vmatprep.subr.mxu0 0.0
      %2312 = vmatpush2.msra.mxu0 0.0
      %2313 = vmatprep.subr.mxu0 0.0
      %2314 = vmatpush2.msra.mxu0 0.0
      %2315 = vmatprep.subr.mxu0 0.0
      %2316 = vmatpush2.msra.mxu0 0.0
      %2317 = vmatprep.subr.mxu0 0.0
      %2318 = vmatpush2.msra.mxu0 0.0
      %2319 = vmatprep.subr.mxu0 0.0
      %2320 = vmatpush2.msra.mxu0 0.0
      %2321 = vmatprep.subr.mxu0 0.0
      %2322 = vmatpush2.msra.mxu0 0.0
      %2323 = vmatprep.subr.mxu0 0.0
      %2324 = vmatpush2.msra.mxu0 0.0
      %2325 = vmatprep.subr.mxu0 0.0
      %2326 = vmatpush2.msra.mxu0 0.0
      %2327 = vmatprep.subr.mxu0 0.0
      %2328 = vmatpush2.msra.mxu0 0.0
      %2329 = vmatprep.mubr.f32.mxu0 0.0
      %2330 = vmatmul.mubr.f32.gmra.mxu0 %v2218
      %v2331 = vpop.f32.mrf.mxu0
      %v2332 = vadd.f32 %v2201, %v2331
      %v2333 = vpop.f32.mrf.mxu0
      %2334 = vmatprep.mubr.f32.mxu0 0.0
      %2335 = vmatmul.mubr.f32.gmra.mxu0 %v2221
      %v2336 = vpop.f32.mrf.mxu0
      %v2337 = vadd.f32 %v2202, %v2336
      %v2338 = vpop.f32.mrf.mxu0
      %2339 = vmatprep.mubr.f32.mxu0 0.0
      %2340 = vmatmul.mubr.f32.gmra.mxu0 %v2224
      %v2341 = vpop.f32.mrf.mxu0
      %v2342 = vadd.f32 %v2203, %v2341
      %v2343 = vpop.f32.mrf.mxu0
      %2344 = vmatprep.mubr.f32.mxu0 0.0
      %2345 = vmatmul.mubr.f32.gmra.mxu0 %v2227
      %v2346 = vpop.f32.mrf.mxu0
      %v2347 = vadd.f32 %v2204, %v2346
      %v2348 = vpop.f32.mrf.mxu0
      %2349 = vmatprep.mubr.f32.mxu0 0.0
      %2350 = vmatmul.mubr.f32.gmra.mxu0 %v2230
      %v2351 = vpop.f32.mrf.mxu0
      %v2352 = vadd.f32 %v2205, %v2351
      %v2353 = vpop.f32.mrf.mxu0
      %2354 = vmatprep.mubr.f32.mxu0 0.0
      %2355 = vmatmul.mubr.f32.gmra.mxu0 %v2233
      %v2356 = vpop.f32.mrf.mxu0
      %v2357 = vadd.f32 %v2206, %v2356
      %v2358 = vpop.f32.mrf.mxu0
      %2359 = vmatprep.mubr.f32.mxu0 0.0
      %2360 = vmatmul.mubr.f32.gmra.mxu0 %v2236
      %v2361 = vpop.f32.mrf.mxu0
      %v2362 = vadd.f32 %v2207, %v2361
      %v2363 = vpop.f32.mrf.mxu0
      %2364 = vmatprep.mubr.f32.mxu0 0.0
      %2365 = vmatmul.mubr.f32.gmra.mxu0 %v2239
      %v2366 = vpop.f32.mrf.mxu0
      %v2367 = vadd.f32 %v2208, %v2366
      %v2368 = vpop.f32.mrf.mxu0
      %2369 = vmatprep.mubr.f32.mxu0 0.0
      %2370 = vmatmul.mubr.f32.gmra.mxu0 %v2242
      %v2371 = vpop.f32.mrf.mxu0
      %v2372 = vadd.f32 %v2209, %v2371
      %v2373 = vpop.f32.mrf.mxu0
      %2374 = vmatprep.mubr.f32.mxu0 0.0
      %2375 = vmatmul.mubr.f32.gmra.mxu0 %v2245
      %v2376 = vpop.f32.mrf.mxu0
      %v2377 = vadd.f32 %v2210, %v2376
      %v2378 = vpop.f32.mrf.mxu0
      %2379 = vmatprep.mubr.f32.mxu0 0.0
      %2380 = vmatmul.mubr.f32.gmra.mxu0 %v2248
      %v2381 = vpop.f32.mrf.mxu0
      %v2382 = vadd.f32 %v2211, %v2381
      %v2383 = vpop.f32.mrf.mxu0
      %2384 = vmatprep.mubr.f32.mxu0 0.0
      %2385 = vmatmul.mubr.f32.gmra.mxu0 %v2251
      %v2386 = vpop.f32.mrf.mxu0
      %v2387 = vadd.f32 %v2212, %v2386
      %v2388 = vpop.f32.mrf.mxu0
      %2389 = vmatprep.mubr.f32.mxu0 0.0
      %2390 = vmatmul.mubr.f32.gmra.mxu0 %v2254
      %v2391 = vpop.f32.mrf.mxu0
      %v2392 = vadd.f32 %v2213, %v2391
      %v2393 = vpop.f32.mrf.mxu0
      %2394 = vmatprep.mubr.f32.mxu0 0.0
      %2395 = vmatmul.mubr.f32.gmra.mxu0 %v2257
      %v2396 = vpop.f32.mrf.mxu0
      %v2397 = vadd.f32 %v2214, %v2396
      %v2398 = vpop.f32.mrf.mxu0
      %2399 = vmatprep.mubr.f32.mxu0 0.0
      %2400 = vmatmul.mubr.f32.gmra.mxu0 %v2260
      %v2401 = vpop.f32.mrf.mxu0
      %v2402 = vadd.f32 %v2215, %v2401
      %v2403 = vpop.f32.mrf.mxu0
      %2404 = vmatprep.mubr.f32.mxu0 0.0
      %2405 = vmatmul.mubr.f32.gmra.mxu0 %v2263
      %v2406 = vpop.f32.mrf.mxu0
      %v2407 = vadd.f32 %v2216, %v2406
      %v2408 = vpop.f32.mrf.mxu0
      %2409 = vdwg.mxu0
      %vm2410 = vcmask 97280
      %2411 = vst.msk [vmem:[%s388] sm:$0xff] %vm2410, %v2332
      %2412 = vst.msk [vmem:[%s388 + $0x8] sm:$0xff] %vm2410, %v2337
      %2413 = vst.msk [vmem:[%s388 + $0x10] sm:$0xff] %vm2410, %v2342
      %2414 = vst.msk [vmem:[%s388 + $0x18] sm:$0xff] %vm2410, %v2347
      %2415 = vst.msk [vmem:[%s388 + $0x20] sm:$0xff] %vm2410, %v2352
      %2416 = vst.msk [vmem:[%s388 + $0x28] sm:$0xff] %vm2410, %v2357
      %2417 = vst.msk [vmem:[%s388 + $0x30] sm:$0xff] %vm2410, %v2362
      %2418 = vst.msk [vmem:[%s388 + $0x38] sm:$0xff] %vm2410, %v2367
      %2419 = vst.msk [vmem:[%s388 + $0x40] sm:$0xff] %vm2410, %v2372
      %2420 = vst.msk [vmem:[%s388 + $0x48] sm:$0xff] %vm2410, %v2377
      %2421 = vst.msk [vmem:[%s388 + $0x50] sm:$0xff] %vm2410, %v2382
      %2422 = vst.msk [vmem:[%s388 + $0x58] sm:$0xff] %vm2410, %v2387
      %2423 = vst.msk [vmem:[%s388 + $0x60] sm:$0xff] %vm2410, %v2392
      %2424 = vst.msk [vmem:[%s388 + $0x68] sm:$0xff] %vm2410, %v2397
      %2425 = vst.msk [vmem:[%s388 + $0x70] sm:$0xff] %vm2410, %v2402
      %2426 = vst.msk [vmem:[%s388 + $0x78] sm:$0xff] %vm2410, %v2407
      %s2427 = smul.u32 16, %s22
      %p2428 = scmp.lt.s32.totalorder %s2427, 31
      %s2429 = scalar_select %p2428, %s2427, 31
      %s2430 = smul.addr %s2429, 8
      %s2431 = scalar_lea.vmem %s11, %s2430
      // Predicated region
      $region65: #{tpu_custom_call.1} parent=63 // pred_check
        %p2432 = pneg %p276
      $region66: #{tpu_custom_call.1} parent=63 // pred_check_branch
        %2434 = sbr.rel (%p2432) target = $region68
      $region67: #{tpu_custom_call.1} parent=63 // pred_region
        %s2435 = smul.u32 16, %s22
      $region68: #{tpu_custom_call.1} parent=63 // pred_fallthru
        _
    $region64: #{tpu_custom_call.1} parent=5 // pred_fallthru
      _
    %p2436 = scmp.le.s32.totalorder 2, %s17
    // Predicated region
    $region69: #{tpu_custom_call.1} parent=5 // pred_check
      %p2437 = pneg %p2436
    $region70: #{tpu_custom_call.1} parent=5 // pred_check_branch
      %2439 = sbr.rel (%p2437) target = $region72
    $region71: #{tpu_custom_call.1} parent=5 // pred_region
      %s2440 = ssub.s32 %s17, 2
      // Predicated region
      $region73: #{tpu_custom_call.1} parent=71 // pred_check
        %p2441 = pneg %p282
      $region74: #{tpu_custom_call.1} parent=71 // pred_check_branch
        %2443 = sbr.rel (%p2441) target = $region76
      $region75: #{tpu_custom_call.1} parent=71 // pred_region
        %s2444 = smul.u32 16, %s23
        %p2445 = scmp.lt.s32.totalorder %s2444, 31
        %s2446 = scalar_select %p2445, %s2444, 31
        %s2447 = smul.addr %s2446, 8
        %s2448 = scalar_lea.vmem %s11, %s2447
      $region76: #{tpu_custom_call.1} parent=71 // pred_fallthru
        _
    $region72: #{tpu_custom_call.1} parent=5 // pred_fallthru
      _
  $region6: #{tpu_custom_call.1} parent=0 // loop_footer
    %s21 = sadd.s32 1, %s17
  $region7: #{tpu_custom_call.1} parent=0 // loop_footer_branch
    %16 = sbr.rel target = $region3
  $region8: #{tpu_custom_call.1} parent=0 // loop_exit
    _

</llo_original>
